<compile_context>
chip_gen: v7x
topology: tpu7x:2x2x1
jax: 0.10.0
libtpu: 0.0.40
codegen_flags: <defaults>
</compile_context>

<pallas_src>
import math
from functools import partial

import jax
import jax.numpy as jnp
from jax.experimental import pallas as pl
from jax.experimental.pallas import tpu as pltpu

# --- small synthetic config (real BLEURT pads to seq 512; kept small here) ---
B = 2          # batch
S = 8          # sequence length
H = 32         # hidden size
NH = 2         # attention heads
HD = H // NH   # head dim
F = 64         # FFN intermediate size
V = 100        # vocab size
NTYPE = 2      # token-type vocab
L = 2          # transformer layers
BS = B * S
EPS = 1e-12
LANES = 128    # lane-dense output width


def _layernorm(x, gamma, beta):
    mu = jnp.mean(x, axis=-1, keepdims=True)
    xc = x - mu
    var = jnp.mean(xc * xc, axis=-1, keepdims=True)
    return xc * jax.lax.rsqrt(var + EPS) * gamma + beta


def _gelu(x):
    # tanh-approx GELU (EUP tanh slot).  HF BERT default is exact erf-GELU;
    # deviation is tiny and tanh is guaranteed to lower on Mosaic.
    c = math.sqrt(2.0 / math.pi)
    return 0.5 * x * (1.0 + jnp.tanh(c * (x + 0.044715 * x * x * x)))


# ----------------------------- fused kernel -----------------------------------

def bleurt_kernel(
    # embedding inputs (only read at layer 0)
    wemb_ref, temb_ref, pos_ref, eg_ref, eb_ref,
    # attention mask bias + labels
    maskb_ref, labels_ref,
    # per-layer weights (leading layer axis squeezed by BlockSpec)
    wqkv_ref, bqkv_ref, wo_ref, bo_ref, ln1g_ref, ln1b_ref,
    w1_ref, b1_ref, w2_ref, b2_ref, ln2g_ref, ln2b_ref,
    # head weights (only read at last layer)
    pw_ref, pb_ref, cw_ref, cb_ref,
    # outputs (written only at last layer)
    scores_ref, loss_ref,
    # scratch: carried hidden state (B*S, H), VMEM-resident across layers
    h_scr,
):
    layer = pl.program_id(0)

    # ---- embeddings (fused in: layer 0 only) ----
    @pl.when(layer == 0)
    def _():
        emb = wemb_ref[...] + temb_ref[...] + pos_ref[...]          # (B,S,H)
        emb = _layernorm(emb, eg_ref[...], eb_ref[...])
        h_scr[...] = emb.reshape(BS, H)

    h = h_scr[...]                                                  # (B*S, H)

    # ---- self-attention: fused QKV, batch collapsed into matmul rows ----
    qkv = jnp.dot(h, wqkv_ref[...],
                  preferred_element_type=jnp.float32) + bqkv_ref[...]   # (B*S, 3H)
    qkv3 = qkv.reshape(B, S, 3 * H)
    maskb = maskb_ref[...]                                          # (B,1,S)
    scale = 1.0 / math.sqrt(HD)

    ctx_heads = []
    for n in range(NH):                                             # NH is static
        q = qkv3[:, :, n * HD:(n + 1) * HD]
        k = qkv3[:, :, H + n * HD:H + (n + 1) * HD]
        v = qkv3[:, :, 2 * H + n * HD:2 * H + (n + 1) * HD]
        s = jnp.einsum('bqd,bkd->bqk', q, k,
                       preferred_element_type=jnp.float32) * scale
        p = jax.nn.softmax(s + maskb, axis=-1)
        ctx_heads.append(jnp.einsum('bqk,bkd->bqd', p, v,
                                    preferred_element_type=jnp.float32))
    ctx = jnp.concatenate(ctx_heads, axis=-1).reshape(BS, H)        # (B*S, H)

    attn = jnp.dot(ctx, wo_ref[...],
                   preferred_element_type=jnp.float32) + bo_ref[...]
    h1 = _layernorm(h + attn, ln1g_ref[...], ln1b_ref[...])

    # ---- FFN ----
    f = _gelu(jnp.dot(h1, w1_ref[...],
                      preferred_element_type=jnp.float32) + b1_ref[...])
    f = jnp.dot(f, w2_ref[...],
                preferred_element_type=jnp.float32) + b2_ref[...]
    h_new = _layernorm(h1 + f, ln2g_ref[...], ln2b_ref[...])
    h_scr[...] = h_new

    # ---- pooler + classifier + MSE (fused in: last layer only) ----
    @pl.when(layer == L - 1)
    def _():
        cls = h_new.reshape(B, S, H)[:, 0, :]                       # (B,H)  [CLS]
        pooled = jnp.tanh(jnp.dot(cls, pw_ref[...],
                                  preferred_element_type=jnp.float32) + pb_ref[...])
        # classifier weight stored (out=1, in=H) like torch Linear -> row-dot
        score = jnp.sum(pooled * cw_ref[...], axis=-1, keepdims=True) + cb_ref[...]  # (B,1)
        diff = score - labels_ref[...]
        loss = jnp.mean(diff * diff)
        # lane-dense writeback (avoid sub-128 masked partial stores)
        scores_ref[...] = jnp.broadcast_to(score, (B, LANES))
        loss_ref[...] = jnp.broadcast_to(loss.reshape(1, 1), (1, LANES))


# ----------------------------- wrapper ----------------------------------------

def bleurt_forward(params, input_ids, attention_mask, token_type_ids, labels):
    # TODO(synk): tokenizer (AutoTokenizer) has no Pallas equivalent; embedding
    # row lookup is a plain XLA gather here (O(B*S*H)); at real vocab scale this
    # would be a scalar-prefetched DMA row gather inside the kernel.
    word_emb = jnp.take(params['word_emb'], input_ids, axis=0)        # (B,S,H)
    type_emb = jnp.take(params['type_emb'], token_type_ids, axis=0)   # (B,S,H)
    mask_bias = (1.0 - attention_mask.astype(jnp.float32))[:, None, :] * -1e9

    const2 = lambda shape: pl.BlockSpec(shape, lambda l: (0, 0))
    const3 = lambda shape: pl.BlockSpec(shape, lambda l: (0, 0, 0))
    layer2 = lambda d0, d1: pl.BlockSpec((None, d0, d1), lambda l: (l, 0, 0))

    in_specs = [
        const3((B, S, H)),                      # word embeddings (gathered)
        const3((B, S, H)),                      # type embeddings (gathered)
        const3((1, S, H)),                      # positional embeddings
        const3((1, 1, H)), const3((1, 1, H)),   # emb LN gamma/beta
        const3((B, 1, S)),                      # additive attention-mask bias
        const2((B, 1)),                         # labels
        layer2(H, 3 * H), layer2(1, 3 * H),     # fused qkv w, b
        layer2(H, H), layer2(1, H),             # wo, bo
        layer2(1, H), layer2(1, H),             # ln1 gamma, beta
        layer2(H, F), layer2(1, F),             # ffn w1, b1
        layer2(F, H), layer2(1, H),             # ffn w2, b2
        layer2(1, H), layer2(1, H),             # ln2 gamma, beta
        const2((H, H)), const2((1, H)),         # pooler w, b
        const2((1, H)), const2((1, 1)),         # classifier w (out,in), b
    ]

    scores_pad, loss_pad = pl.pallas_call(
        bleurt_kernel,
        grid=(L,),
        in_specs=in_specs,
        out_specs=(pl.BlockSpec((B, LANES), lambda l: (0, 0)),
                   pl.BlockSpec((1, LANES), lambda l: (0, 0))),
        out_shape=(jax.ShapeDtypeStruct((B, LANES), jnp.float32),
                   jax.ShapeDtypeStruct((1, LANES), jnp.float32)),
        scratch_shapes=[pltpu.VMEM((BS, H), jnp.float32)],
        compiler_params=pltpu.CompilerParams(
            dimension_semantics=("arbitrary",)),
    )(word_emb, type_emb, params['pos_emb'],
      params['emb_ln_g'], params['emb_ln_b'],
      mask_bias, labels.reshape(B, 1),
      params['wqkv'], params['bqkv'],
      params['wo'], params['bo'],
      params['ln1_g'], params['ln1_b'],
      params['w1'], params['b1'], params['w2'], params['b2'],
      params['ln2_g'], params['ln2_b'],
      params['pooler_w'], params['pooler_b'],
      params['cls_w'], params['cls_b'])

    return {'score': scores_pad[:, 0], 'loss': loss_pad[0, 0]}


# ----------------------------- params ------------------------------------------

def init_params(key):
    ks = jax.random.split(key, 20)
    sd = 0.02
    nrm = lambda k, shape: sd * jax.random.normal(k, shape, dtype=jnp.float32)
    zeros = lambda shape: jnp.zeros(shape, jnp.float32)
    ones = lambda shape: jnp.ones(shape, jnp.float32)
    p = {
        'word_emb': nrm(ks[0], (V, H)),
        'type_emb': nrm(ks[1], (NTYPE, H)),
        'pos_emb':  nrm(ks[2], (1, S, H)),
        'emb_ln_g': ones((1, 1, H)), 'emb_ln_b': zeros((1, 1, H)),
        'wqkv': nrm(ks[3], (L, H, 3 * H)), 'bqkv': zeros((L, 1, 3 * H)),
        'wo': nrm(ks[6], (L, H, H)), 'bo': zeros((L, 1, H)),
        'ln1_g': ones((L, 1, H)), 'ln1_b': zeros((L, 1, H)),
        'w1': nrm(ks[7], (L, H, F)), 'b1': zeros((L, 1, F)),
        'w2': nrm(ks[8], (L, F, H)), 'b2': zeros((L, 1, H)),
        'ln2_g': ones((L, 1, H)), 'ln2_b': zeros((L, 1, H)),
        'pooler_w': nrm(ks[9], (H, H)), 'pooler_b': zeros((1, H)),
        'cls_w': nrm(ks[10], (1, H)), 'cls_b': zeros((1, 1)),
    }
    return p


if __name__ == "__main__":
    key = jax.random.PRNGKey(0)
    kp, kid, ktt, klab = jax.random.split(key, 4)
    params = init_params(kp)

    # synthetic "tokenizer output", padded to S with pad_token=0
    lengths = jnp.array([6, 5], dtype=jnp.int32)
    attention_mask = (jnp.arange(S)[None, :] < lengths[:, None]).astype(jnp.int32)
    input_ids = jax.random.randint(kid, (B, S), 1, V, dtype=jnp.int32) * attention_mask
    token_type_ids = jax.random.randint(ktt, (B, S), 0, NTYPE, dtype=jnp.int32) * attention_mask
    labels = jax.random.uniform(klab, (B,), dtype=jnp.float32)

    fwd = jax.jit(partial(bleurt_forward, params))
    out = fwd(input_ids, attention_mask, token_type_ids, labels)
    jax.block_until_ready(out)
    assert out['score'].shape == (B,) and out['loss'].shape == ()
    print("KERNEL_OK")
</pallas_src>

<mosaic_0001>
module attributes {stable_mosaic.version = 11 : i64} {
  func.func @bleurt_kernel(%arg0: i32, %arg1: memref<2x8x32xf32, #tpu.memory_space<vmem>>, %arg2: memref<2x8x32xf32, #tpu.memory_space<vmem>>, %arg3: memref<1x8x32xf32, #tpu.memory_space<vmem>>, %arg4: memref<1x1x32xf32, #tpu.memory_space<vmem>>, %arg5: memref<1x1x32xf32, #tpu.memory_space<vmem>>, %arg6: memref<2x1x8xf32, #tpu.memory_space<vmem>>, %arg7: memref<2x1xf32, #tpu.memory_space<vmem>>, %arg8: memref<1x32x96xf32, #tpu.memory_space<vmem>>, %arg9: memref<1x1x96xf32, #tpu.memory_space<vmem>>, %arg10: memref<1x32x32xf32, #tpu.memory_space<vmem>>, %arg11: memref<1x1x32xf32, #tpu.memory_space<vmem>>, %arg12: memref<1x1x32xf32, #tpu.memory_space<vmem>>, %arg13: memref<1x1x32xf32, #tpu.memory_space<vmem>>, %arg14: memref<1x32x64xf32, #tpu.memory_space<vmem>>, %arg15: memref<1x1x64xf32, #tpu.memory_space<vmem>>, %arg16: memref<1x64x32xf32, #tpu.memory_space<vmem>>, %arg17: memref<1x1x32xf32, #tpu.memory_space<vmem>>, %arg18: memref<1x1x32xf32, #tpu.memory_space<vmem>>, %arg19: memref<1x1x32xf32, #tpu.memory_space<vmem>>, %arg20: memref<32x32xf32, #tpu.memory_space<vmem>>, %arg21: memref<1x32xf32, #tpu.memory_space<vmem>>, %arg22: memref<1x32xf32, #tpu.memory_space<vmem>>, %arg23: memref<1x1xf32, #tpu.memory_space<vmem>>, %arg24: memref<2x128xf32, #tpu.memory_space<vmem>>, %arg25: memref<1x128xf32, #tpu.memory_space<vmem>>, %arg26: memref<16x32xf32, #tpu.memory_space<vmem>>) attributes {dimension_semantics = [#tpu.dimension_semantics<arbitrary>], iteration_bounds = array<i64: 2>, scalar_prefetch = 0 : i64, scratch_operands = 1 : i64, tpu.core_type = #tpu.core_type<tc>, window_params = [{pipeline_mode = #tpu.pipeline_mode<synchronous>, transform_indices = @transform_0, window_bounds = array<i64: 2, 8, 32>}, {pipeline_mode = #tpu.pipeline_mode<synchronous>, transform_indices = @transform_1, window_bounds = array<i64: 2, 8, 32>}, {pipeline_mode = #tpu.pipeline_mode<synchronous>, transform_indices = @transform_2, window_bounds = array<i64: 1, 8, 32>}, {pipeline_mode = #tpu.pipeline_mode<synchronous>, transform_indices = @transform_3, window_bounds = array<i64: 1, 1, 32>}, {pipeline_mode = #tpu.pipeline_mode<synchronous>, transform_indices = @transform_4, window_bounds = array<i64: 1, 1, 32>}, {pipeline_mode = #tpu.pipeline_mode<synchronous>, transform_indices = @transform_5, window_bounds = array<i64: 2, 1, 8>}, {pipeline_mode = #tpu.pipeline_mode<synchronous>, transform_indices = @transform_6, window_bounds = array<i64: 2, 1>}, {transform_indices = @transform_7, window_bounds = array<i64: 1, 32, 96>}, {transform_indices = @transform_8, window_bounds = array<i64: 1, 1, 96>}, {transform_indices = @transform_9, window_bounds = array<i64: 1, 32, 32>}, {transform_indices = @transform_10, window_bounds = array<i64: 1, 1, 32>}, {transform_indices = @transform_11, window_bounds = array<i64: 1, 1, 32>}, {transform_indices = @transform_12, window_bounds = array<i64: 1, 1, 32>}, {transform_indices = @transform_13, window_bounds = array<i64: 1, 32, 64>}, {transform_indices = @transform_14, window_bounds = array<i64: 1, 1, 64>}, {transform_indices = @transform_15, window_bounds = array<i64: 1, 64, 32>}, {transform_indices = @transform_16, window_bounds = array<i64: 1, 1, 32>}, {transform_indices = @transform_17, window_bounds = array<i64: 1, 1, 32>}, {transform_indices = @transform_18, window_bounds = array<i64: 1, 1, 32>}, {pipeline_mode = #tpu.pipeline_mode<synchronous>, transform_indices = @transform_19, window_bounds = array<i64: 32, 32>}, {pipeline_mode = #tpu.pipeline_mode<synchronous>, transform_indices = @transform_20, window_bounds = array<i64: 1, 32>}, {pipeline_mode = #tpu.pipeline_mode<synchronous>, transform_indices = @transform_21, window_bounds = array<i64: 1, 32>}, {pipeline_mode = #tpu.pipeline_mode<synchronous>, transform_indices = @transform_22, window_bounds = array<i64: 1, 1>}, {pipeline_mode = #tpu.pipeline_mode<synchronous>, transform_indices = @transform_23, window_bounds = array<i64: 2, 128>}, {pipeline_mode = #tpu.pipeline_mode<synchronous>, transform_indices = @transform_24, window_bounds = array<i64: 1, 128>}]} {
    %c0_i32 = arith.constant 0 : i32
    %0 = arith.cmpi eq, %arg0, %c0_i32 : i32
    %1 = arith.extui %0 : i1 to i32
    %c0_i32_0 = arith.constant 0 : i32
    %2 = arith.cmpi ne, %1, %c0_i32_0 : i32
    scf.if %2 {
      %c0_73 = arith.constant 0 : index
      %c0_74 = arith.constant 0 : index
      %c0_75 = arith.constant 0 : index
      %143 = vector.load %arg1[%c0_73, %c0_74, %c0_75] : memref<2x8x32xf32, #tpu.memory_space<vmem>>, vector<2x8x32xf32>
      %c0_76 = arith.constant 0 : index
      %c0_77 = arith.constant 0 : index
      %c0_78 = arith.constant 0 : index
      %144 = vector.load %arg2[%c0_76, %c0_77, %c0_78] : memref<2x8x32xf32, #tpu.memory_space<vmem>>, vector<2x8x32xf32>
      %145 = arith.addf %143, %144 : vector<2x8x32xf32>
      %c0_79 = arith.constant 0 : index
      %c0_80 = arith.constant 0 : index
      %c0_81 = arith.constant 0 : index
      %146 = vector.load %arg3[%c0_79, %c0_80, %c0_81] : memref<1x8x32xf32, #tpu.memory_space<vmem>>, vector<1x8x32xf32>
      %147 = vector.broadcast %146 : vector<1x8x32xf32> to vector<2x8x32xf32>
      %148 = arith.addf %145, %147 : vector<2x8x32xf32>
      %c0_82 = arith.constant 0 : index
      %c0_83 = arith.constant 0 : index
      %c0_84 = arith.constant 0 : index
      %149 = vector.load %arg4[%c0_82, %c0_83, %c0_84] : memref<1x1x32xf32, #tpu.memory_space<vmem>>, vector<1x1x32xf32>
      %c0_85 = arith.constant 0 : index
      %c0_86 = arith.constant 0 : index
      %c0_87 = arith.constant 0 : index
      %150 = vector.load %arg5[%c0_85, %c0_86, %c0_87] : memref<1x1x32xf32, #tpu.memory_space<vmem>>, vector<1x1x32xf32>
      %cst_88 = arith.constant dense<0.000000e+00> : vector<2x8xf32>
      %151 = vector.multi_reduction <add>, %148, %cst_88 [2] : vector<2x8x32xf32> to vector<2x8xf32>
      %152 = vector.shape_cast %151 : vector<2x8xf32> to vector<2x8x1xf32>
      %cst_89 = arith.constant 3.200000e+01 : f32
      %153 = vector.broadcast %cst_89 : f32 to vector<2x8x1xf32>
      %154 = arith.divf %152, %153 : vector<2x8x1xf32>
      %155 = vector.broadcast %154 : vector<2x8x1xf32> to vector<2x8x32xf32>
      %156 = arith.subf %148, %155 : vector<2x8x32xf32>
      %157 = arith.mulf %156, %156 : vector<2x8x32xf32>
      %cst_90 = arith.constant dense<0.000000e+00> : vector<2x8xf32>
      %158 = vector.multi_reduction <add>, %157, %cst_90 [2] : vector<2x8x32xf32> to vector<2x8xf32>
      %159 = vector.shape_cast %158 : vector<2x8xf32> to vector<2x8x1xf32>
      %cst_91 = arith.constant 3.200000e+01 : f32
      %160 = vector.broadcast %cst_91 : f32 to vector<2x8x1xf32>
      %161 = arith.divf %159, %160 : vector<2x8x1xf32>
      %cst_92 = arith.constant 9.99999996E-13 : f32
      %162 = vector.broadcast %cst_92 : f32 to vector<2x8x1xf32>
      %163 = arith.addf %161, %162 : vector<2x8x1xf32>
      %164 = math.rsqrt %163 : vector<2x8x1xf32>
      %165 = vector.broadcast %164 : vector<2x8x1xf32> to vector<2x8x32xf32>
      %166 = arith.mulf %156, %165 : vector<2x8x32xf32>
      %167 = vector.broadcast %149 : vector<1x1x32xf32> to vector<2x8x32xf32>
      %168 = arith.mulf %166, %167 : vector<2x8x32xf32>
      %169 = vector.broadcast %150 : vector<1x1x32xf32> to vector<2x8x32xf32>
      %170 = arith.addf %168, %169 : vector<2x8x32xf32>
      %171 = vector.shape_cast %170 : vector<2x8x32xf32> to vector<16x32xf32>
      %c0_93 = arith.constant 0 : index
      %c0_94 = arith.constant 0 : index
      %172 = vector.load %arg26[%c0_93, %c0_94] : memref<16x32xf32, #tpu.memory_space<vmem>>, vector<16x32xf32>
      tpu.vector_store %arg26[%c0_93, %c0_94], %171 {strides = array<i32>} : memref<16x32xf32, #tpu.memory_space<vmem>>, vector<16x32xf32>,
    } else {
    }
    %c0 = arith.constant 0 : index
    %c0_1 = arith.constant 0 : index
    %3 = vector.load %arg26[%c0, %c0_1] : memref<16x32xf32, #tpu.memory_space<vmem>>, vector<16x32xf32>
    %c0_2 = arith.constant 0 : index
    %c0_3 = arith.constant 0 : index
    %c0_4 = arith.constant 0 : index
    %4 = vector.load %arg8[%c0_2, %c0_3, %c0_4] : memref<1x32x96xf32, #tpu.memory_space<vmem>>, vector<1x32x96xf32>
    %5 = vector.shape_cast %4 : vector<1x32x96xf32> to vector<32x96xf32>
    %cst = arith.constant dense<0.000000e+00> : vector<16x96xf32>
    %6 = tpu.matmul %3, %5, %cst {dimension_numbers = #tpu.dot_dimension_numbers<[1], [0], [0], [1], [0, 0, 1, 1], [], []>} : vector<16x32xf32>, vector<32x96xf32>, vector<16x96xf32> -> vector<16x96xf32>
    %c0_5 = arith.constant 0 : index
    %c0_6 = arith.constant 0 : index
    %c0_7 = arith.constant 0 : index
    %7 = vector.load %arg9[%c0_5, %c0_6, %c0_7] : memref<1x1x96xf32, #tpu.memory_space<vmem>>, vector<1x1x96xf32>
    %8 = vector.shape_cast %7 : vector<1x1x96xf32> to vector<1x96xf32>
    %9 = vector.broadcast %8 : vector<1x96xf32> to vector<16x96xf32>
    %10 = arith.addf %6, %9 : vector<16x96xf32>
    %11 = vector.shape_cast %10 : vector<16x96xf32> to vector<2x8x96xf32>
    %c0_8 = arith.constant 0 : index
    %c0_9 = arith.constant 0 : index
    %c0_10 = arith.constant 0 : index
    %12 = vector.load %arg6[%c0_8, %c0_9, %c0_10] : memref<2x1x8xf32, #tpu.memory_space<vmem>>, vector<2x1x8xf32>
    %13 = vector.extract_strided_slice %11 {offsets = [0, 0, 0], sizes = [2, 8, 16], strides = [1, 1, 1]} : vector<2x8x96xf32> to vector<2x8x16xf32>
    %14 = vector.extract_strided_slice %11 {offsets = [0, 0, 32], sizes = [2, 8, 16], strides = [1, 1, 1]} : vector<2x8x96xf32> to vector<2x8x16xf32>
    %15 = vector.extract_strided_slice %11 {offsets = [0, 0, 64], sizes = [2, 8, 16], strides = [1, 1, 1]} : vector<2x8x96xf32> to vector<2x8x16xf32>
    "tpu.trace_start"() <{level = 10 : i32, message = "bqd,bkd->bqk"}> : () -> ()
    %cst_11 = arith.constant dense<0.000000e+00> : vector<2x8x8xf32>
    %16 = tpu.matmul %13, %14, %cst_11 {dimension_numbers = #tpu.dot_dimension_numbers<[2], [2], [1], [1], [0, 0, 0, 1, 1, 1], [0], [0]>} : vector<2x8x16xf32>, vector<2x8x16xf32>, vector<2x8x8xf32> -> vector<2x8x8xf32>
    "tpu.trace_stop"() : () -> ()
    %cst_12 = arith.constant 2.500000e-01 : f32
    %17 = vector.broadcast %cst_12 : f32 to vector<2x8x8xf32>
    %18 = arith.mulf %16, %17 : vector<2x8x8xf32>
    %19 = vector.broadcast %12 : vector<2x1x8xf32> to vector<2x8x8xf32>
    %20 = arith.addf %18, %19 : vector<2x8x8xf32>
    %cst_13 = arith.constant dense<0xFF800000> : vector<2x8xf32>
    %21 = vector.multi_reduction <maximumf>, %20, %cst_13 [2] : vector<2x8x8xf32> to vector<2x8xf32>
    %cst_14 = arith.constant 0xFF800000 : f32
    %22 = vector.broadcast %cst_14 : f32 to vector<2x8xf32>
    %23 = arith.maximumf %22, %21 : vector<2x8xf32>
    %24 = vector.shape_cast %23 : vector<2x8xf32> to vector<2x8x1xf32>
    %25 = vector.broadcast %24 : vector<2x8x1xf32> to vector<2x8x8xf32>
    %26 = arith.subf %20, %25 : vector<2x8x8xf32>
    %27 = math.exp %26 : vector<2x8x8xf32>
    %cst_15 = arith.constant dense<0.000000e+00> : vector<2x8xf32>
    %28 = vector.multi_reduction <add>, %27, %cst_15 [2] : vector<2x8x8xf32> to vector<2x8xf32>
    %29 = vector.shape_cast %28 : vector<2x8xf32> to vector<2x8x1xf32>
    %30 = vector.broadcast %29 : vector<2x8x1xf32> to vector<2x8x8xf32>
    %31 = arith.divf %27, %30 : vector<2x8x8xf32>
    "tpu.trace_start"() <{level = 10 : i32, message = "bqk,bkd->bqd"}> : () -> ()
    %cst_16 = arith.constant dense<0.000000e+00> : vector<2x8x16xf32>
    %32 = tpu.matmul %31, %15, %cst_16 {dimension_numbers = #tpu.dot_dimension_numbers<[2], [1], [1], [2], [0, 0, 0, 1, 1, 2], [0], [0]>} : vector<2x8x8xf32>, vector<2x8x16xf32>, vector<2x8x16xf32> -> vector<2x8x16xf32>
    "tpu.trace_stop"() : () -> ()
    %33 = vector.extract_strided_slice %11 {offsets = [0, 0, 16], sizes = [2, 8, 16], strides = [1, 1, 1]} : vector<2x8x96xf32> to vector<2x8x16xf32>
    %34 = vector.extract_strided_slice %11 {offsets = [0, 0, 48], sizes = [2, 8, 16], strides = [1, 1, 1]} : vector<2x8x96xf32> to vector<2x8x16xf32>
    %35 = vector.extract_strided_slice %11 {offsets = [0, 0, 80], sizes = [2, 8, 16], strides = [1, 1, 1]} : vector<2x8x96xf32> to vector<2x8x16xf32>
    "tpu.trace_start"() <{level = 10 : i32, message = "bqd,bkd->bqk"}> : () -> ()
    %cst_17 = arith.constant dense<0.000000e+00> : vector<2x8x8xf32>
    %36 = tpu.matmul %33, %34, %cst_17 {dimension_numbers = #tpu.dot_dimension_numbers<[2], [2], [1], [1], [0, 0, 0, 1, 1, 1], [0], [0]>} : vector<2x8x16xf32>, vector<2x8x16xf32>, vector<2x8x8xf32> -> vector<2x8x8xf32>
    "tpu.trace_stop"() : () -> ()
    %cst_18 = arith.constant 2.500000e-01 : f32
    %37 = vector.broadcast %cst_18 : f32 to vector<2x8x8xf32>
    %38 = arith.mulf %36, %37 : vector<2x8x8xf32>
    %39 = vector.broadcast %12 : vector<2x1x8xf32> to vector<2x8x8xf32>
    %40 = arith.addf %38, %39 : vector<2x8x8xf32>
    %cst_19 = arith.constant dense<0xFF800000> : vector<2x8xf32>
    %41 = vector.multi_reduction <maximumf>, %40, %cst_19 [2] : vector<2x8x8xf32> to vector<2x8xf32>
    %cst_20 = arith.constant 0xFF800000 : f32
    %42 = vector.broadcast %cst_20 : f32 to vector<2x8xf32>
    %43 = arith.maximumf %42, %41 : vector<2x8xf32>
    %44 = vector.shape_cast %43 : vector<2x8xf32> to vector<2x8x1xf32>
    %45 = vector.broadcast %44 : vector<2x8x1xf32> to vector<2x8x8xf32>
    %46 = arith.subf %40, %45 : vector<2x8x8xf32>
    %47 = math.exp %46 : vector<2x8x8xf32>
    %cst_21 = arith.constant dense<0.000000e+00> : vector<2x8xf32>
    %48 = vector.multi_reduction <add>, %47, %cst_21 [2] : vector<2x8x8xf32> to vector<2x8xf32>
    %49 = vector.shape_cast %48 : vector<2x8xf32> to vector<2x8x1xf32>
    %50 = vector.broadcast %49 : vector<2x8x1xf32> to vector<2x8x8xf32>
    %51 = arith.divf %47, %50 : vector<2x8x8xf32>
    "tpu.trace_start"() <{level = 10 : i32, message = "bqk,bkd->bqd"}> : () -> ()
    %cst_22 = arith.constant dense<0.000000e+00> : vector<2x8x16xf32>
    %52 = tpu.matmul %51, %35, %cst_22 {dimension_numbers = #tpu.dot_dimension_numbers<[2], [1], [1], [2], [0, 0, 0, 1, 1, 2], [0], [0]>} : vector<2x8x8xf32>, vector<2x8x16xf32>, vector<2x8x16xf32> -> vector<2x8x16xf32>
    "tpu.trace_stop"() : () -> ()
    %53 = tpu.concatenate %32, %52 in 2 : vector<2x8x16xf32>, vector<2x8x16xf32> -> vector<2x8x32xf32>
    %54 = vector.shape_cast %53 : vector<2x8x32xf32> to vector<16x32xf32>
    %c0_23 = arith.constant 0 : index
    %c0_24 = arith.constant 0 : index
    %c0_25 = arith.constant 0 : index
    %55 = vector.load %arg10[%c0_23, %c0_24, %c0_25] : memref<1x32x32xf32, #tpu.memory_space<vmem>>, vector<1x32x32xf32>
    %56 = vector.shape_cast %55 : vector<1x32x32xf32> to vector<32x32xf32>
    %cst_26 = arith.constant dense<0.000000e+00> : vector<16x32xf32>
    %57 = tpu.matmul %54, %56, %cst_26 {dimension_numbers = #tpu.dot_dimension_numbers<[1], [0], [0], [1], [0, 0, 1, 1], [], []>} : vector<16x32xf32>, vector<32x32xf32>, vector<16x32xf32> -> vector<16x32xf32>
    %c0_27 = arith.constant 0 : index
    %c0_28 = arith.constant 0 : index
    %c0_29 = arith.constant 0 : index
    %58 = vector.load %arg11[%c0_27, %c0_28, %c0_29] : memref<1x1x32xf32, #tpu.memory_space<vmem>>, vector<1x1x32xf32>
    %59 = vector.shape_cast %58 : vector<1x1x32xf32> to vector<1x32xf32>
    %60 = vector.broadcast %59 : vector<1x32xf32> to vector<16x32xf32>
    %61 = arith.addf %57, %60 : vector<16x32xf32>
    %62 = arith.addf %3, %61 : vector<16x32xf32>
    %c0_30 = arith.constant 0 : index
    %c0_31 = arith.constant 0 : index
    %c0_32 = arith.constant 0 : index
    %63 = vector.load %arg12[%c0_30, %c0_31, %c0_32] : memref<1x1x32xf32, #tpu.memory_space<vmem>>, vector<1x1x32xf32>
    %64 = vector.shape_cast %63 : vector<1x1x32xf32> to vector<1x32xf32>
    %c0_33 = arith.constant 0 : index
    %c0_34 = arith.constant 0 : index
    %c0_35 = arith.constant 0 : index
    %65 = vector.load %arg13[%c0_33, %c0_34, %c0_35] : memref<1x1x32xf32, #tpu.memory_space<vmem>>, vector<1x1x32xf32>
    %66 = vector.shape_cast %65 : vector<1x1x32xf32> to vector<1x32xf32>
    %cst_36 = arith.constant dense<0.000000e+00> : vector<16xf32>
    %67 = vector.multi_reduction <add>, %62, %cst_36 [1] : vector<16x32xf32> to vector<16xf32>
    %68 = vector.shape_cast %67 : vector<16xf32> to vector<16x1xf32>
    %cst_37 = arith.constant 3.200000e+01 : f32
    %69 = vector.broadcast %cst_37 : f32 to vector<16x1xf32>
    %70 = arith.divf %68, %69 : vector<16x1xf32>
    %71 = vector.broadcast %70 : vector<16x1xf32> to vector<16x32xf32>
    %72 = arith.subf %62, %71 : vector<16x32xf32>
    %73 = arith.mulf %72, %72 : vector<16x32xf32>
    %cst_38 = arith.constant dense<0.000000e+00> : vector<16xf32>
    %74 = vector.multi_reduction <add>, %73, %cst_38 [1] : vector<16x32xf32> to vector<16xf32>
    %75 = vector.shape_cast %74 : vector<16xf32> to vector<16x1xf32>
    %cst_39 = arith.constant 3.200000e+01 : f32
    %76 = vector.broadcast %cst_39 : f32 to vector<16x1xf32>
    %77 = arith.divf %75, %76 : vector<16x1xf32>
    %cst_40 = arith.constant 9.99999996E-13 : f32
    %78 = vector.broadcast %cst_40 : f32 to vector<16x1xf32>
    %79 = arith.addf %77, %78 : vector<16x1xf32>
    %80 = math.rsqrt %79 : vector<16x1xf32>
    %81 = vector.broadcast %80 : vector<16x1xf32> to vector<16x32xf32>
    %82 = arith.mulf %72, %81 : vector<16x32xf32>
    %83 = vector.broadcast %64 : vector<1x32xf32> to vector<16x32xf32>
    %84 = arith.mulf %82, %83 : vector<16x32xf32>
    %85 = vector.broadcast %66 : vector<1x32xf32> to vector<16x32xf32>
    %86 = arith.addf %84, %85 : vector<16x32xf32>
    %c0_41 = arith.constant 0 : index
    %c0_42 = arith.constant 0 : index
    %c0_43 = arith.constant 0 : index
    %87 = vector.load %arg14[%c0_41, %c0_42, %c0_43] : memref<1x32x64xf32, #tpu.memory_space<vmem>>, vector<1x32x64xf32>
    %88 = vector.shape_cast %87 : vector<1x32x64xf32> to vector<32x64xf32>
    %cst_44 = arith.constant dense<0.000000e+00> : vector<16x64xf32>
    %89 = tpu.matmul %86, %88, %cst_44 {dimension_numbers = #tpu.dot_dimension_numbers<[1], [0], [0], [1], [0, 0, 1, 1], [], []>} : vector<16x32xf32>, vector<32x64xf32>, vector<16x64xf32> -> vector<16x64xf32>
    %c0_45 = arith.constant 0 : index
    %c0_46 = arith.constant 0 : index
    %c0_47 = arith.constant 0 : index
    %90 = vector.load %arg15[%c0_45, %c0_46, %c0_47] : memref<1x1x64xf32, #tpu.memory_space<vmem>>, vector<1x1x64xf32>
    %91 = vector.shape_cast %90 : vector<1x1x64xf32> to vector<1x64xf32>
    %92 = vector.broadcast %91 : vector<1x64xf32> to vector<16x64xf32>
    %93 = arith.addf %89, %92 : vector<16x64xf32>
    %cst_48 = arith.constant 5.000000e-01 : f32
    %94 = vector.broadcast %cst_48 : f32 to vector<16x64xf32>
    %95 = arith.mulf %94, %93 : vector<16x64xf32>
    %cst_49 = arith.constant 4.471500e-02 : f32
    %96 = vector.broadcast %cst_49 : f32 to vector<16x64xf32>
    %97 = arith.mulf %96, %93 : vector<16x64xf32>
    %98 = arith.mulf %97, %93 : vector<16x64xf32>
    %99 = arith.mulf %98, %93 : vector<16x64xf32>
    %100 = arith.addf %93, %99 : vector<16x64xf32>
    %cst_50 = arith.constant 0.797884583 : f32
    %101 = vector.broadcast %cst_50 : f32 to vector<16x64xf32>
    %102 = arith.mulf %101, %100 : vector<16x64xf32>
    %103 = math.tanh %102 : vector<16x64xf32>
    %cst_51 = arith.constant 1.000000e+00 : f32
    %104 = vector.broadcast %cst_51 : f32 to vector<16x64xf32>
    %105 = arith.addf %104, %103 : vector<16x64xf32>
    %106 = arith.mulf %95, %105 : vector<16x64xf32>
    %c0_52 = arith.constant 0 : index
    %c0_53 = arith.constant 0 : index
    %c0_54 = arith.constant 0 : index
    %107 = vector.load %arg16[%c0_52, %c0_53, %c0_54] : memref<1x64x32xf32, #tpu.memory_space<vmem>>, vector<1x64x32xf32>
    %108 = vector.shape_cast %107 : vector<1x64x32xf32> to vector<64x32xf32>
    %cst_55 = arith.constant dense<0.000000e+00> : vector<16x32xf32>
    %109 = tpu.matmul %106, %108, %cst_55 {dimension_numbers = #tpu.dot_dimension_numbers<[1], [0], [0], [1], [0, 0, 1, 1], [], []>} : vector<16x64xf32>, vector<64x32xf32>, vector<16x32xf32> -> vector<16x32xf32>
    %c0_56 = arith.constant 0 : index
    %c0_57 = arith.constant 0 : index
    %c0_58 = arith.constant 0 : index
    %110 = vector.load %arg17[%c0_56, %c0_57, %c0_58] : memref<1x1x32xf32, #tpu.memory_space<vmem>>, vector<1x1x32xf32>
    %111 = vector.shape_cast %110 : vector<1x1x32xf32> to vector<1x32xf32>
    %112 = vector.broadcast %111 : vector<1x32xf32> to vector<16x32xf32>
    %113 = arith.addf %109, %112 : vector<16x32xf32>
    %114 = arith.addf %86, %113 : vector<16x32xf32>
    %c0_59 = arith.constant 0 : index
    %c0_60 = arith.constant 0 : index
    %c0_61 = arith.constant 0 : index
    %115 = vector.load %arg18[%c0_59, %c0_60, %c0_61] : memref<1x1x32xf32, #tpu.memory_space<vmem>>, vector<1x1x32xf32>
    %116 = vector.shape_cast %115 : vector<1x1x32xf32> to vector<1x32xf32>
    %c0_62 = arith.constant 0 : index
    %c0_63 = arith.constant 0 : index
    %c0_64 = arith.constant 0 : index
    %117 = vector.load %arg19[%c0_62, %c0_63, %c0_64] : memref<1x1x32xf32, #tpu.memory_space<vmem>>, vector<1x1x32xf32>
    %118 = vector.shape_cast %117 : vector<1x1x32xf32> to vector<1x32xf32>
    %cst_65 = arith.constant dense<0.000000e+00> : vector<16xf32>
    %119 = vector.multi_reduction <add>, %114, %cst_65 [1] : vector<16x32xf32> to vector<16xf32>
    %120 = vector.shape_cast %119 : vector<16xf32> to vector<16x1xf32>
    %cst_66 = arith.constant 3.200000e+01 : f32
    %121 = vector.broadcast %cst_66 : f32 to vector<16x1xf32>
    %122 = arith.divf %120, %121 : vector<16x1xf32>
    %123 = vector.broadcast %122 : vector<16x1xf32> to vector<16x32xf32>
    %124 = arith.subf %114, %123 : vector<16x32xf32>
    %125 = arith.mulf %124, %124 : vector<16x32xf32>
    %cst_67 = arith.constant dense<0.000000e+00> : vector<16xf32>
    %126 = vector.multi_reduction <add>, %125, %cst_67 [1] : vector<16x32xf32> to vector<16xf32>
    %127 = vector.shape_cast %126 : vector<16xf32> to vector<16x1xf32>
    %cst_68 = arith.constant 3.200000e+01 : f32
    %128 = vector.broadcast %cst_68 : f32 to vector<16x1xf32>
    %129 = arith.divf %127, %128 : vector<16x1xf32>
    %cst_69 = arith.constant 9.99999996E-13 : f32
    %130 = vector.broadcast %cst_69 : f32 to vector<16x1xf32>
    %131 = arith.addf %129, %130 : vector<16x1xf32>
    %132 = math.rsqrt %131 : vector<16x1xf32>
    %133 = vector.broadcast %132 : vector<16x1xf32> to vector<16x32xf32>
    %134 = arith.mulf %124, %133 : vector<16x32xf32>
    %135 = vector.broadcast %116 : vector<1x32xf32> to vector<16x32xf32>
    %136 = arith.mulf %134, %135 : vector<16x32xf32>
    %137 = vector.broadcast %118 : vector<1x32xf32> to vector<16x32xf32>
    %138 = arith.addf %136, %137 : vector<16x32xf32>
    %c0_70 = arith.constant 0 : index
    %c0_71 = arith.constant 0 : index
    %139 = vector.load %arg26[%c0_70, %c0_71] : memref<16x32xf32, #tpu.memory_space<vmem>>, vector<16x32xf32>
    tpu.vector_store %arg26[%c0_70, %c0_71], %138 {strides = array<i32>} : memref<16x32xf32, #tpu.memory_space<vmem>>, vector<16x32xf32>,
    %c1_i32 = arith.constant 1 : i32
    %140 = arith.cmpi eq, %arg0, %c1_i32 : i32
    %141 = arith.extui %140 : i1 to i32
    %c0_i32_72 = arith.constant 0 : i32
    %142 = arith.cmpi ne, %141, %c0_i32_72 : i32
    scf.if %142 {
      %143 = vector.shape_cast %138 : vector<16x32xf32> to vector<2x8x32xf32>
      %144 = vector.extract_strided_slice %143 {offsets = [0, 0, 0], sizes = [2, 1, 32], strides = [1, 1, 1]} : vector<2x8x32xf32> to vector<2x1x32xf32>
      %145 = vector.shape_cast %144 : vector<2x1x32xf32> to vector<2x32xf32>
      %c0_73 = arith.constant 0 : index
      %c0_74 = arith.constant 0 : index
      %146 = vector.load %arg20[%c0_73, %c0_74] : memref<32x32xf32, #tpu.memory_space<vmem>>, vector<32x32xf32>
      %cst_75 = arith.constant dense<0.000000e+00> : vector<2x32xf32>
      %147 = tpu.matmul %145, %146, %cst_75 {dimension_numbers = #tpu.dot_dimension_numbers<[1], [0], [0], [1], [0, 0, 1, 1], [], []>} : vector<2x32xf32>, vector<32x32xf32>, vector<2x32xf32> -> vector<2x32xf32>
      %c0_76 = arith.constant 0 : index
      %c0_77 = arith.constant 0 : index
      %148 = vector.load %arg21[%c0_76, %c0_77] : memref<1x32xf32, #tpu.memory_space<vmem>>, vector<1x32xf32>
      %149 = vector.broadcast %148 : vector<1x32xf32> to vector<2x32xf32>
      %150 = arith.addf %147, %149 : vector<2x32xf32>
      %151 = math.tanh %150 : vector<2x32xf32>
      %c0_78 = arith.constant 0 : index
      %c0_79 = arith.constant 0 : index
      %152 = vector.load %arg22[%c0_78, %c0_79] : memref<1x32xf32, #tpu.memory_space<vmem>>, vector<1x32xf32>
      %153 = vector.broadcast %152 : vector<1x32xf32> to vector<2x32xf32>
      %154 = arith.mulf %151, %153 : vector<2x32xf32>
      %cst_80 = arith.constant dense<0.000000e+00> : vector<2xf32>
      %155 = vector.multi_reduction <add>, %154, %cst_80 [1] : vector<2x32xf32> to vector<2xf32>
      %156 = vector.shape_cast %155 : vector<2xf32> to vector<2x1xf32>
      %c0_81 = arith.constant 0 : index
      %c0_82 = arith.constant 0 : index
      %157 = vector.load %arg23[%c0_81, %c0_82] : memref<1x1xf32, #tpu.memory_space<vmem>>, vector<1x1xf32>
      %158 = vector.broadcast %157 : vector<1x1xf32> to vector<2x1xf32>
      %159 = arith.addf %156, %158 : vector<2x1xf32>
      %c0_83 = arith.constant 0 : index
      %c0_84 = arith.constant 0 : index
      %160 = vector.load %arg7[%c0_83, %c0_84] : memref<2x1xf32, #tpu.memory_space<vmem>>, vector<2x1xf32>
      %161 = arith.subf %159, %160 : vector<2x1xf32>
      %162 = arith.mulf %161, %161 : vector<2x1xf32>
      %163 = vector.shape_cast %162 : vector<2x1xf32> to vector<1x2x1xf32>
      %cst_85 = arith.constant dense<0.000000e+00> : vector<1xf32>
      %164 = vector.multi_reduction <add>, %163, %cst_85 [1, 2] : vector<1x2x1xf32> to vector<1xf32>
      %165 = vector.shape_cast %164 : vector<1xf32> to vector<1x1x1xf32>
      %166 = vector.extract %165[0, 0, 0] : f32 from vector<1x1x1xf32>
      %cst_86 = arith.constant 2.000000e+00 : f32
      %167 = arith.divf %166, %cst_86 : f32
      %168 = vector.shape_cast %159 : vector<2x1xf32> to vector<2x1xf32>
      %169 = vector.broadcast %168 : vector<2x1xf32> to vector<2x128xf32>
      %c0_87 = arith.constant 0 : index
      %c0_88 = arith.constant 0 : index
      %170 = vector.load %arg24[%c0_87, %c0_88] : memref<2x128xf32, #tpu.memory_space<vmem>>, vector<2x128xf32>
      tpu.vector_store %arg24[%c0_87, %c0_88], %169 {strides = array<i32>} : memref<2x128xf32, #tpu.memory_space<vmem>>, vector<2x128xf32>,
      %171 = vector.broadcast %167 : f32 to vector<1x1xf32>
      %172 = vector.shape_cast %171 : vector<1x1xf32> to vector<1x1xf32>
      %173 = vector.broadcast %172 : vector<1x1xf32> to vector<1x128xf32>
      %c0_89 = arith.constant 0 : index
      %c0_90 = arith.constant 0 : index
      %174 = vector.load %arg25[%c0_89, %c0_90] : memref<1x128xf32, #tpu.memory_space<vmem>>, vector<1x128xf32>
      tpu.vector_store %arg25[%c0_89, %c0_90], %173 {strides = array<i32>} : memref<1x128xf32, #tpu.memory_space<vmem>>, vector<1x128xf32>,
    } else {
    }
    return
  }
  func.func @transform_0(%arg0: i32) -> (i32, i32, i32) {
    %c0_i32 = arith.constant 0 : i32
    %c0_i32_0 = arith.constant 0 : i32
    %c0_i32_1 = arith.constant 0 : i32
    %c0_i32_2 = arith.constant 0 : i32
    return %c0_i32, %c0_i32_0, %c0_i32_1 : i32, i32, i32
  }
  func.func @transform_1(%arg0: i32) -> (i32, i32, i32) {
    %c0_i32 = arith.constant 0 : i32
    %c0_i32_0 = arith.constant 0 : i32
    %c0_i32_1 = arith.constant 0 : i32
    %c0_i32_2 = arith.constant 0 : i32
    return %c0_i32, %c0_i32_0, %c0_i32_1 : i32, i32, i32
  }
  func.func @transform_2(%arg0: i32) -> (i32, i32, i32) {
    %c0_i32 = arith.constant 0 : i32
    %c0_i32_0 = arith.constant 0 : i32
    %c0_i32_1 = arith.constant 0 : i32
    %c0_i32_2 = arith.constant 0 : i32
    return %c0_i32, %c0_i32_0, %c0_i32_1 : i32, i32, i32
  }
  func.func @transform_3(%arg0: i32) -> (i32, i32, i32) {
    %c0_i32 = arith.constant 0 : i32
    %c0_i32_0 = arith.constant 0 : i32
    %c0_i32_1 = arith.constant 0 : i32
    %c0_i32_2 = arith.constant 0 : i32
    return %c0_i32, %c0_i32_0, %c0_i32_1 : i32, i32, i32
  }
  func.func @transform_4(%arg0: i32) -> (i32, i32, i32) {
    %c0_i32 = arith.constant 0 : i32
    %c0_i32_0 = arith.constant 0 : i32
    %c0_i32_1 = arith.constant 0 : i32
    %c0_i32_2 = arith.constant 0 : i32
    return %c0_i32, %c0_i32_0, %c0_i32_1 : i32, i32, i32
  }
  func.func @transform_5(%arg0: i32) -> (i32, i32, i32) {
    %c0_i32 = arith.constant 0 : i32
    %c0_i32_0 = arith.constant 0 : i32
    %c0_i32_1 = arith.constant 0 : i32
    %c0_i32_2 = arith.constant 0 : i32
    return %c0_i32, %c0_i32_0, %c0_i32_1 : i32, i32, i32
  }
  func.func @transform_6(%arg0: i32) -> (i32, i32) {
    %c0_i32 = arith.constant 0 : i32
    %c0_i32_0 = arith.constant 0 : i32
    %c0_i32_1 = arith.constant 0 : i32
    return %c0_i32, %c0_i32_0 : i32, i32
  }
  func.func @transform_7(%arg0: i32) -> (i32, i32, i32) {
    %c0_i32 = arith.constant 0 : i32
    %c0_i32_0 = arith.constant 0 : i32
    %c0_i32_1 = arith.constant 0 : i32
    return %arg0, %c0_i32, %c0_i32_0 : i32, i32, i32
  }
  func.func @transform_8(%arg0: i32) -> (i32, i32, i32) {
    %c0_i32 = arith.constant 0 : i32
    %c0_i32_0 = arith.constant 0 : i32
    %c0_i32_1 = arith.constant 0 : i32
    return %arg0, %c0_i32, %c0_i32_0 : i32, i32, i32
  }
  func.func @transform_9(%arg0: i32) -> (i32, i32, i32) {
    %c0_i32 = arith.constant 0 : i32
    %c0_i32_0 = arith.constant 0 : i32
    %c0_i32_1 = arith.constant 0 : i32
    return %arg0, %c0_i32, %c0_i32_0 : i32, i32, i32
  }
  func.func @transform_10(%arg0: i32) -> (i32, i32, i32) {
    %c0_i32 = arith.constant 0 : i32
    %c0_i32_0 = arith.constant 0 : i32
    %c0_i32_1 = arith.constant 0 : i32
    return %arg0, %c0_i32, %c0_i32_0 : i32, i32, i32
  }
  func.func @transform_11(%arg0: i32) -> (i32, i32, i32) {
    %c0_i32 = arith.constant 0 : i32
    %c0_i32_0 = arith.constant 0 : i32
    %c0_i32_1 = arith.constant 0 : i32
    return %arg0, %c0_i32, %c0_i32_0 : i32, i32, i32
  }
  func.func @transform_12(%arg0: i32) -> (i32, i32, i32) {
    %c0_i32 = arith.constant 0 : i32
    %c0_i32_0 = arith.constant 0 : i32
    %c0_i32_1 = arith.constant 0 : i32
    return %arg0, %c0_i32, %c0_i32_0 : i32, i32, i32
  }
  func.func @transform_13(%arg0: i32) -> (i32, i32, i32) {
    %c0_i32 = arith.constant 0 : i32
    %c0_i32_0 = arith.constant 0 : i32
    %c0_i32_1 = arith.constant 0 : i32
    return %arg0, %c0_i32, %c0_i32_0 : i32, i32, i32
  }
  func.func @transform_14(%arg0: i32) -> (i32, i32, i32) {
    %c0_i32 = arith.constant 0 : i32
    %c0_i32_0 = arith.constant 0 : i32
    %c0_i32_1 = arith.constant 0 : i32
    return %arg0, %c0_i32, %c0_i32_0 : i32, i32, i32
  }
  func.func @transform_15(%arg0: i32) -> (i32, i32, i32) {
    %c0_i32 = arith.constant 0 : i32
    %c0_i32_0 = arith.constant 0 : i32
    %c0_i32_1 = arith.constant 0 : i32
    return %arg0, %c0_i32, %c0_i32_0 : i32, i32, i32
  }
  func.func @transform_16(%arg0: i32) -> (i32, i32, i32) {
    %c0_i32 = arith.constant 0 : i32
    %c0_i32_0 = arith.constant 0 : i32
    %c0_i32_1 = arith.constant 0 : i32
    return %arg0, %c0_i32, %c0_i32_0 : i32, i32, i32
  }
  func.func @transform_17(%arg0: i32) -> (i32, i32, i32) {
    %c0_i32 = arith.constant 0 : i32
    %c0_i32_0 = arith.constant 0 : i32
    %c0_i32_1 = arith.constant 0 : i32
    return %arg0, %c0_i32, %c0_i32_0 : i32, i32, i32
  }
  func.func @transform_18(%arg0: i32) -> (i32, i32, i32) {
    %c0_i32 = arith.constant 0 : i32
    %c0_i32_0 = arith.constant 0 : i32
    %c0_i32_1 = arith.constant 0 : i32
    return %arg0, %c0_i32, %c0_i32_0 : i32, i32, i32
  }
  func.func @transform_19(%arg0: i32) -> (i32, i32) {
    %c0_i32 = arith.constant 0 : i32
    %c0_i32_0 = arith.constant 0 : i32
    %c0_i32_1 = arith.constant 0 : i32
    return %c0_i32, %c0_i32_0 : i32, i32
  }
  func.func @transform_20(%arg0: i32) -> (i32, i32) {
    %c0_i32 = arith.constant 0 : i32
    %c0_i32_0 = arith.constant 0 : i32
    %c0_i32_1 = arith.constant 0 : i32
    return %c0_i32, %c0_i32_0 : i32, i32
  }
  func.func @transform_21(%arg0: i32) -> (i32, i32) {
    %c0_i32 = arith.constant 0 : i32
    %c0_i32_0 = arith.constant 0 : i32
    %c0_i32_1 = arith.constant 0 : i32
    return %c0_i32, %c0_i32_0 : i32, i32
  }
  func.func @transform_22(%arg0: i32) -> (i32, i32) {
    %c0_i32 = arith.constant 0 : i32
    %c0_i32_0 = arith.constant 0 : i32
    %c0_i32_1 = arith.constant 0 : i32
    return %c0_i32, %c0_i32_0 : i32, i32
  }
  func.func @transform_23(%arg0: i32) -> (i32, i32) {
    %c0_i32 = arith.constant 0 : i32
    %c0_i32_0 = arith.constant 0 : i32
    %c0_i32_1 = arith.constant 0 : i32
    return %c0_i32, %c0_i32_0 : i32, i32
  }
  func.func @transform_24(%arg0: i32) -> (i32, i32) {
    %c0_i32 = arith.constant 0 : i32
    %c0_i32_0 = arith.constant 0 : i32
    %c0_i32_1 = arith.constant 0 : i32
    return %c0_i32, %c0_i32_0 : i32, i32
  }
}

</mosaic_0001>

<llo_original>
// kernel: bleurt_forward.1
$region0: #{bleurt_forward.1}
  #allocation0 [shape = 'u32[]', space=smem, size = 0x4, offset = 0x4, fixed_abs, tag = 'smem constant byte address 0x4 - core index']
  #allocation1 [shape = 'u32[144,128]{1,0:T(1,128)}', space=vmem, size = 0x12000, scoped, tag = 'internal scratch']
  #allocation2 [shape = 'f32[16,32]{1,0:T(8,128)}', space=vmem, size = 0x2000, scoped, tag = 'scratch operand']
  #allocation3 [shape = 'f32[1,1]{1,0:T(1,128)S(1)}', space=vmem, size = 0x200, scoped, tag = 'scoped memory for bleurt_forward.1']
  %s0 = inlined_call_operand.vmem [shape: f32[2,8,32], index: 0, kind: input, shape index: {}]
  %s1 = inlined_call_operand.vmem [shape: f32[2,8,32], index: 1, kind: input, shape index: {}]
  %s2 = inlined_call_operand.vmem [shape: f32[1,8,32], index: 2, kind: input, shape index: {}]
  %s3 = inlined_call_operand.vmem [shape: f32[1,1,32], index: 3, kind: input, shape index: {}]
  %s4 = inlined_call_operand.vmem [shape: f32[1,1,32], index: 4, kind: input, shape index: {}]
  %s5 = inlined_call_operand.vmem [shape: f32[2,1,8], index: 5, kind: input, shape index: {}]
  %s6 = inlined_call_operand.vmem [shape: f32[2,1], index: 6, kind: input, shape index: {}]
  %s7 = inlined_call_operand.vmem [shape: f32[2,32,96], index: 7, kind: input, shape index: {}]
  %s8 = inlined_call_operand.vmem [shape: f32[2,1,96], index: 8, kind: input, shape index: {}]
  %s9 = inlined_call_operand.vmem [shape: f32[2,32,32], index: 9, kind: input, shape index: {}]
  %s10 = inlined_call_operand.vmem [shape: f32[2,1,32], index: 10, kind: input, shape index: {}, may-alias: {10,12,16,18}]
  %s11 = inlined_call_operand.vmem [shape: f32[2,1,32], index: 11, kind: input, shape index: {}, may-alias: {11,17}]
  %s12 = inlined_call_operand.vmem [shape: f32[2,1,32], index: 12, kind: input, shape index: {}, may-alias: {10,12,16,18}]
  %s13 = inlined_call_operand.vmem [shape: f32[2,32,64], index: 13, kind: input, shape index: {}]
  %s14 = inlined_call_operand.vmem [shape: f32[2,1,64], index: 14, kind: input, shape index: {}]
  %s15 = inlined_call_operand.vmem [shape: f32[2,64,32], index: 15, kind: input, shape index: {}]
  %s16 = inlined_call_operand.vmem [shape: f32[2,1,32], index: 16, kind: input, shape index: {}, may-alias: {10,12,16,18}]
  %s17 = inlined_call_operand.vmem [shape: f32[2,1,32], index: 17, kind: input, shape index: {}, may-alias: {11,17}]
  %s18 = inlined_call_operand.vmem [shape: f32[2,1,32], index: 18, kind: input, shape index: {}, may-alias: {10,12,16,18}]
  %s19 = inlined_call_operand.vmem [shape: f32[32,32], index: 19, kind: input, shape index: {}]
  %s20 = inlined_call_operand.vmem [shape: f32[1,32], index: 20, kind: input, shape index: {}]
  %s21 = inlined_call_operand.vmem [shape: f32[1,32], index: 21, kind: input, shape index: {}]
  %s22 = inlined_call_operand.<no memory space> [shape: f32[1,1], index: 22, kind: input, shape index: {}]
  %s23 = inlined_call_operand.vmem [shape: f32[2,128], index: 23, kind: output, shape index: {0}]
  %s24 = inlined_call_operand.hbm [shape: f32[1,128], index: 24, kind: output, shape index: {1}]
  %25 = xla_tuple %s23, %s24
  %s26 = sld [smem:[#allocation0]]
  $region141: #{bleurt_forward.1} parent=0
    _
  %s28 = ssub.s32 1, %s26
  %s29 = scalar_select 0, %s28, %s26
  %v30 = vstv %s22
  %31 = vst [vmem:[#allocation3] sm:$0x1] %v30
  $region1: #{bleurt_forward.1} parent=0
    #allocation4 [shape = 'u8[512]{0}', space=vmem, size = 0x400, scoped, tag = 'output window, operand 1, single buffered']
    #allocation5 [shape = 's32[2]{0}', space=sflag, size = 0x8, scoped, tag = 'scoped memory for bleurt_forward.1']
    %32 = vsyncpa [#allocation5], 0
    loop: start=0, step=1, limit=4
    $region2: #{bleurt_forward.1} parent=1 // loop_pre_header
      _
    $region3: #{bleurt_forward.1} parent=1 // loop_header
      %s34 = sphi 0, %s38
      %p35 = scmp.ge.s32.totalorder %s34, 4
      %s42 = sphi 0, %s42
      %s44 = sphi 0, %s42
      %s45 = sphi 0, %s44
      %s59 = sphi 0, %s45
      %s63 = sphi 0, %s63
      %s65 = sphi 0, %s63
      %s66 = sphi 0, %s65
      %s80 = sphi 0, %s66
      %s84 = sphi 0, %s84
      %s86 = sphi 0, %s84
      %s87 = sphi 0, %s86
      %s101 = sphi 0, %s87
      %s105 = sphi 0, %s105
      %s107 = sphi 0, %s105
      %s108 = sphi 0, %s107
      %s122 = sphi 0, %s108
      %s126 = sphi 0, %s126
      %s128 = sphi 0, %s126
      %s129 = sphi 0, %s128
      %s143 = sphi 0, %s129
      %s147 = sphi 0, %s147
      %s149 = sphi 0, %s147
      %s150 = sphi 0, %s149
      %s164 = sphi 0, %s150
      %s168 = sphi 0, %s168
      %s170 = sphi 0, %s168
      %s171 = sphi 0, %s170
      %s185 = sphi 0, %s171
      %s191 = sphi 0, %s193
      %s194 = sphi 0, %s191
      %s195 = sphi 0, %s194
      %s211 = sphi 0, %s195
      %s217 = sphi 0, %s219
      %s220 = sphi 0, %s217
      %s221 = sphi 0, %s220
      %s237 = sphi 0, %s221
      %s243 = sphi 0, %s245
      %s246 = sphi 0, %s243
      %s247 = sphi 0, %s246
      %s263 = sphi 0, %s247
      %s269 = sphi 0, %s271
      %s272 = sphi 0, %s269
      %s273 = sphi 0, %s272
      %s289 = sphi 0, %s273
      %s295 = sphi 0, %s297
      %s298 = sphi 0, %s295
      %s299 = sphi 0, %s298
      %s315 = sphi 0, %s299
      %s321 = sphi 0, %s323
      %s324 = sphi 0, %s321
      %s325 = sphi 0, %s324
      %s341 = sphi 0, %s325
      %s347 = sphi 0, %s349
      %s350 = sphi 0, %s347
      %s351 = sphi 0, %s350
      %s367 = sphi 0, %s351
      %s373 = sphi 0, %s375
      %s376 = sphi 0, %s373
      %s377 = sphi 0, %s376
      %s393 = sphi 0, %s377
      %s399 = sphi 0, %s401
      %s402 = sphi 0, %s399
      %s403 = sphi 0, %s402
      %s419 = sphi 0, %s403
      %s425 = sphi 0, %s427
      %s428 = sphi 0, %s425
      %s429 = sphi 0, %s428
      %s445 = sphi 0, %s429
      %s451 = sphi 0, %s453
      %s454 = sphi 0, %s451
      %s455 = sphi 0, %s454
      %s471 = sphi 0, %s455
      %s477 = sphi 0, %s479
      %s480 = sphi 0, %s477
      %s481 = sphi 0, %s480
      %s497 = sphi 0, %s481
      %s501 = sphi 0, %s501
      %s503 = sphi 0, %s501
      %s504 = sphi 0, %s503
      %s518 = sphi 0, %s504
      %s522 = sphi 0, %s522
      %s524 = sphi 0, %s522
      %s525 = sphi 0, %s524
      %s539 = sphi 0, %s525
      %s543 = sphi 0, %s543
      %s545 = sphi 0, %s543
      %s546 = sphi 0, %s545
      %s560 = sphi 0, %s546
      %s564 = sphi 0, %s564
      %s566 = sphi 0, %s564
      %s567 = sphi 0, %s566
      %s581 = sphi 0, %s567
      %s585 = sphi 0, %s585
      %s587 = sphi 0, %s585
      %s588 = sphi 0, %s587
      %s602 = sphi 0, %s588
      %s606 = sphi 0, %s606
      %s608 = sphi 0, %s606
      %s609 = sphi 0, %s608
      %s623 = sphi 0, %s609
    $region4: #{bleurt_forward.1} parent=1 // loop_header_branch
      %37 = sbr.rel (%p35) target = $region8
    $region5: #{bleurt_forward.1} parent=1 // loop_body
      %s39 = ssub.s32 %s34, 1
      %s40 = ssub.s32 %s34, 2
      %s41 = sadd.s32 %s34, 1
      %s43 = sadd.s32 %s42, 1
      %p46 = scmp.eq.s32.totalorder %s34, 1
      %p47 = scmp.ne.s32.totalorder %s42, %s44
      %p48 = scmp.eq.s32.totalorder %s34, 0
      %p49 = por %p47, %p48
      %p50 = scmp.ne.s32.totalorder %s42, %s44
      %p51 = scmp.eq.s32.totalorder %s39, 1
      %p52 = por %p50, %p51
      %p53 = scmp.ne.s32.totalorder %s44, %s45
      %p54 = scmp.eq.s32.totalorder %s39, 0
      %p55 = por %p53, %p54
      %p56 = scmp.ne.s32.totalorder %s44, %s45
      %p57 = scmp.eq.s32.totalorder %s40, 1
      %p58 = por %p56, %p57
      %p60 = scmp.ne.s32.totalorder %s45, %s59
      %p61 = scmp.eq.s32.totalorder %s40, 0
      %p62 = por %p60, %p61
      %s64 = sadd.s32 %s63, 1
      %p67 = scmp.eq.s32.totalorder %s34, 1
      %p68 = scmp.ne.s32.totalorder %s63, %s65
      %p69 = scmp.eq.s32.totalorder %s34, 0
      %p70 = por %p68, %p69
      %p71 = scmp.ne.s32.totalorder %s63, %s65
      %p72 = scmp.eq.s32.totalorder %s39, 1
      %p73 = por %p71, %p72
      %p74 = scmp.ne.s32.totalorder %s65, %s66
      %p75 = scmp.eq.s32.totalorder %s39, 0
      %p76 = por %p74, %p75
      %p77 = scmp.ne.s32.totalorder %s65, %s66
      %p78 = scmp.eq.s32.totalorder %s40, 1
      %p79 = por %p77, %p78
      %p81 = scmp.ne.s32.totalorder %s66, %s80
      %p82 = scmp.eq.s32.totalorder %s40, 0
      %p83 = por %p81, %p82
      %s85 = sadd.s32 %s84, 1
      %p88 = scmp.eq.s32.totalorder %s34, 1
      %p89 = scmp.ne.s32.totalorder %s84, %s86
      %p90 = scmp.eq.s32.totalorder %s34, 0
      %p91 = por %p89, %p90
      %p92 = scmp.ne.s32.totalorder %s84, %s86
      %p93 = scmp.eq.s32.totalorder %s39, 1
      %p94 = por %p92, %p93
      %p95 = scmp.ne.s32.totalorder %s86, %s87
      %p96 = scmp.eq.s32.totalorder %s39, 0
      %p97 = por %p95, %p96
      %p98 = scmp.ne.s32.totalorder %s86, %s87
      %p99 = scmp.eq.s32.totalorder %s40, 1
      %p100 = por %p98, %p99
      %p102 = scmp.ne.s32.totalorder %s87, %s101
      %p103 = scmp.eq.s32.totalorder %s40, 0
      %p104 = por %p102, %p103
      %s106 = sadd.s32 %s105, 1
      %p109 = scmp.eq.s32.totalorder %s34, 1
      %p110 = scmp.ne.s32.totalorder %s105, %s107
      %p111 = scmp.eq.s32.totalorder %s34, 0
      %p112 = por %p110, %p111
      %p113 = scmp.ne.s32.totalorder %s105, %s107
      %p114 = scmp.eq.s32.totalorder %s39, 1
      %p115 = por %p113, %p114
      %p116 = scmp.ne.s32.totalorder %s107, %s108
      %p117 = scmp.eq.s32.totalorder %s39, 0
      %p118 = por %p116, %p117
      %p119 = scmp.ne.s32.totalorder %s107, %s108
      %p120 = scmp.eq.s32.totalorder %s40, 1
      %p121 = por %p119, %p120
      %p123 = scmp.ne.s32.totalorder %s108, %s122
      %p124 = scmp.eq.s32.totalorder %s40, 0
      %p125 = por %p123, %p124
      %s127 = sadd.s32 %s126, 1
      %p130 = scmp.eq.s32.totalorder %s34, 1
      %p131 = scmp.ne.s32.totalorder %s126, %s128
      %p132 = scmp.eq.s32.totalorder %s34, 0
      %p133 = por %p131, %p132
      %p134 = scmp.ne.s32.totalorder %s126, %s128
      %p135 = scmp.eq.s32.totalorder %s39, 1
      %p136 = por %p134, %p135
      %p137 = scmp.ne.s32.totalorder %s128, %s129
      %p138 = scmp.eq.s32.totalorder %s39, 0
      %p139 = por %p137, %p138
      %p140 = scmp.ne.s32.totalorder %s128, %s129
      %p141 = scmp.eq.s32.totalorder %s40, 1
      %p142 = por %p140, %p141
      %p144 = scmp.ne.s32.totalorder %s129, %s143
      %p145 = scmp.eq.s32.totalorder %s40, 0
      %p146 = por %p144, %p145
      %s148 = sadd.s32 %s147, 1
      %p151 = scmp.eq.s32.totalorder %s34, 1
      %p152 = scmp.ne.s32.totalorder %s147, %s149
      %p153 = scmp.eq.s32.totalorder %s34, 0
      %p154 = por %p152, %p153
      %p155 = scmp.ne.s32.totalorder %s147, %s149
      %p156 = scmp.eq.s32.totalorder %s39, 1
      %p157 = por %p155, %p156
      %p158 = scmp.ne.s32.totalorder %s149, %s150
      %p159 = scmp.eq.s32.totalorder %s39, 0
      %p160 = por %p158, %p159
      %p161 = scmp.ne.s32.totalorder %s149, %s150
      %p162 = scmp.eq.s32.totalorder %s40, 1
      %p163 = por %p161, %p162
      %p165 = scmp.ne.s32.totalorder %s150, %s164
      %p166 = scmp.eq.s32.totalorder %s40, 0
      %p167 = por %p165, %p166
      %s169 = sadd.s32 %s168, 1
      %p172 = scmp.eq.s32.totalorder %s34, 1
      %p173 = scmp.ne.s32.totalorder %s168, %s170
      %p174 = scmp.eq.s32.totalorder %s34, 0
      %p175 = por %p173, %p174
      %p176 = scmp.ne.s32.totalorder %s168, %s170
      %p177 = scmp.eq.s32.totalorder %s39, 1
      %p178 = por %p176, %p177
      %p179 = scmp.ne.s32.totalorder %s170, %s171
      %p180 = scmp.eq.s32.totalorder %s39, 0
      %p181 = por %p179, %p180
      %p182 = scmp.ne.s32.totalorder %s170, %s171
      %p183 = scmp.eq.s32.totalorder %s40, 1
      %p184 = por %p182, %p183
      %p186 = scmp.ne.s32.totalorder %s171, %s185
      %p187 = scmp.eq.s32.totalorder %s40, 0
      %p188 = por %p186, %p187
      %s189 = ssub.s32 %s34, %s41
      %p190 = scmp.eq.s32.totalorder %s189, 0
      %s192 = sadd.s32 %s191, 1
      %s193 = scalar_select %p190, %s191, %s192
      %p196 = pneg %p190
      %p197 = scmp.eq.s32.totalorder %s34, 1
      %p198 = por %p196, %p197
      %p199 = scmp.ne.s32.totalorder %s191, %s194
      %p200 = scmp.eq.s32.totalorder %s34, 0
      %p201 = por %p199, %p200
      %p202 = scmp.ne.s32.totalorder %s191, %s194
      %p203 = scmp.eq.s32.totalorder %s39, 1
      %p204 = por %p202, %p203
      %p205 = scmp.ne.s32.totalorder %s194, %s195
      %p206 = scmp.eq.s32.totalorder %s39, 0
      %p207 = por %p205, %p206
      %p208 = scmp.ne.s32.totalorder %s194, %s195
      %p209 = scmp.eq.s32.totalorder %s40, 1
      %p210 = por %p208, %p209
      %p212 = scmp.ne.s32.totalorder %s195, %s211
      %p213 = scmp.eq.s32.totalorder %s40, 0
      %p214 = por %p212, %p213
      %s215 = ssub.s32 %s34, %s41
      %p216 = scmp.eq.s32.totalorder %s215, 0
      %s218 = sadd.s32 %s217, 1
      %s219 = scalar_select %p216, %s217, %s218
      %p222 = pneg %p216
      %p223 = scmp.eq.s32.totalorder %s34, 1
      %p224 = por %p222, %p223
      %p225 = scmp.ne.s32.totalorder %s217, %s220
      %p226 = scmp.eq.s32.totalorder %s34, 0
      %p227 = por %p225, %p226
      %p228 = scmp.ne.s32.totalorder %s217, %s220
      %p229 = scmp.eq.s32.totalorder %s39, 1
      %p230 = por %p228, %p229
      %p231 = scmp.ne.s32.totalorder %s220, %s221
      %p232 = scmp.eq.s32.totalorder %s39, 0
      %p233 = por %p231, %p232
      %p234 = scmp.ne.s32.totalorder %s220, %s221
      %p235 = scmp.eq.s32.totalorder %s40, 1
      %p236 = por %p234, %p235
      %p238 = scmp.ne.s32.totalorder %s221, %s237
      %p239 = scmp.eq.s32.totalorder %s40, 0
      %p240 = por %p238, %p239
      %s241 = ssub.s32 %s34, %s41
      %p242 = scmp.eq.s32.totalorder %s241, 0
      %s244 = sadd.s32 %s243, 1
      %s245 = scalar_select %p242, %s243, %s244
      %p248 = pneg %p242
      %p249 = scmp.eq.s32.totalorder %s34, 1
      %p250 = por %p248, %p249
      %p251 = scmp.ne.s32.totalorder %s243, %s246
      %p252 = scmp.eq.s32.totalorder %s34, 0
      %p253 = por %p251, %p252
      %p254 = scmp.ne.s32.totalorder %s243, %s246
      %p255 = scmp.eq.s32.totalorder %s39, 1
      %p256 = por %p254, %p255
      %p257 = scmp.ne.s32.totalorder %s246, %s247
      %p258 = scmp.eq.s32.totalorder %s39, 0
      %p259 = por %p257, %p258
      %p260 = scmp.ne.s32.totalorder %s246, %s247
      %p261 = scmp.eq.s32.totalorder %s40, 1
      %p262 = por %p260, %p261
      %p264 = scmp.ne.s32.totalorder %s247, %s263
      %p265 = scmp.eq.s32.totalorder %s40, 0
      %p266 = por %p264, %p265
      %s267 = ssub.s32 %s34, %s41
      %p268 = scmp.eq.s32.totalorder %s267, 0
      %s270 = sadd.s32 %s269, 1
      %s271 = scalar_select %p268, %s269, %s270
      %p274 = pneg %p268
      %p275 = scmp.eq.s32.totalorder %s34, 1
      %p276 = por %p274, %p275
      %p277 = scmp.ne.s32.totalorder %s269, %s272
      %p278 = scmp.eq.s32.totalorder %s34, 0
      %p279 = por %p277, %p278
      %p280 = scmp.ne.s32.totalorder %s269, %s272
      %p281 = scmp.eq.s32.totalorder %s39, 1
      %p282 = por %p280, %p281
      %p283 = scmp.ne.s32.totalorder %s272, %s273
      %p284 = scmp.eq.s32.totalorder %s39, 0
      %p285 = por %p283, %p284
      %p286 = scmp.ne.s32.totalorder %s272, %s273
      %p287 = scmp.eq.s32.totalorder %s40, 1
      %p288 = por %p286, %p287
      %p290 = scmp.ne.s32.totalorder %s273, %s289
      %p291 = scmp.eq.s32.totalorder %s40, 0
      %p292 = por %p290, %p291
      %s293 = ssub.s32 %s34, %s41
      %p294 = scmp.eq.s32.totalorder %s293, 0
      %s296 = sadd.s32 %s295, 1
      %s297 = scalar_select %p294, %s295, %s296
      %p300 = pneg %p294
      %p301 = scmp.eq.s32.totalorder %s34, 1
      %p302 = por %p300, %p301
      %p303 = scmp.ne.s32.totalorder %s295, %s298
      %p304 = scmp.eq.s32.totalorder %s34, 0
      %p305 = por %p303, %p304
      %p306 = scmp.ne.s32.totalorder %s295, %s298
      %p307 = scmp.eq.s32.totalorder %s39, 1
      %p308 = por %p306, %p307
      %p309 = scmp.ne.s32.totalorder %s298, %s299
      %p310 = scmp.eq.s32.totalorder %s39, 0
      %p311 = por %p309, %p310
      %p312 = scmp.ne.s32.totalorder %s298, %s299
      %p313 = scmp.eq.s32.totalorder %s40, 1
      %p314 = por %p312, %p313
      %p316 = scmp.ne.s32.totalorder %s299, %s315
      %p317 = scmp.eq.s32.totalorder %s40, 0
      %p318 = por %p316, %p317
      %s319 = ssub.s32 %s34, %s41
      %p320 = scmp.eq.s32.totalorder %s319, 0
      %s322 = sadd.s32 %s321, 1
      %s323 = scalar_select %p320, %s321, %s322
      %p326 = pneg %p320
      %p327 = scmp.eq.s32.totalorder %s34, 1
      %p328 = por %p326, %p327
      %p329 = scmp.ne.s32.totalorder %s321, %s324
      %p330 = scmp.eq.s32.totalorder %s34, 0
      %p331 = por %p329, %p330
      %p332 = scmp.ne.s32.totalorder %s321, %s324
      %p333 = scmp.eq.s32.totalorder %s39, 1
      %p334 = por %p332, %p333
      %p335 = scmp.ne.s32.totalorder %s324, %s325
      %p336 = scmp.eq.s32.totalorder %s39, 0
      %p337 = por %p335, %p336
      %p338 = scmp.ne.s32.totalorder %s324, %s325
      %p339 = scmp.eq.s32.totalorder %s40, 1
      %p340 = por %p338, %p339
      %p342 = scmp.ne.s32.totalorder %s325, %s341
      %p343 = scmp.eq.s32.totalorder %s40, 0
      %p344 = por %p342, %p343
      %s345 = ssub.s32 %s34, %s41
      %p346 = scmp.eq.s32.totalorder %s345, 0
      %s348 = sadd.s32 %s347, 1
      %s349 = scalar_select %p346, %s347, %s348
      %p352 = pneg %p346
      %p353 = scmp.eq.s32.totalorder %s34, 1
      %p354 = por %p352, %p353
      %p355 = scmp.ne.s32.totalorder %s347, %s350
      %p356 = scmp.eq.s32.totalorder %s34, 0
      %p357 = por %p355, %p356
      %p358 = scmp.ne.s32.totalorder %s347, %s350
      %p359 = scmp.eq.s32.totalorder %s39, 1
      %p360 = por %p358, %p359
      %p361 = scmp.ne.s32.totalorder %s350, %s351
      %p362 = scmp.eq.s32.totalorder %s39, 0
      %p363 = por %p361, %p362
      %p364 = scmp.ne.s32.totalorder %s350, %s351
      %p365 = scmp.eq.s32.totalorder %s40, 1
      %p366 = por %p364, %p365
      %p368 = scmp.ne.s32.totalorder %s351, %s367
      %p369 = scmp.eq.s32.totalorder %s40, 0
      %p370 = por %p368, %p369
      %s371 = ssub.s32 %s34, %s41
      %p372 = scmp.eq.s32.totalorder %s371, 0
      %s374 = sadd.s32 %s373, 1
      %s375 = scalar_select %p372, %s373, %s374
      %p378 = pneg %p372
      %p379 = scmp.eq.s32.totalorder %s34, 1
      %p380 = por %p378, %p379
      %p381 = scmp.ne.s32.totalorder %s373, %s376
      %p382 = scmp.eq.s32.totalorder %s34, 0
      %p383 = por %p381, %p382
      %p384 = scmp.ne.s32.totalorder %s373, %s376
      %p385 = scmp.eq.s32.totalorder %s39, 1
      %p386 = por %p384, %p385
      %p387 = scmp.ne.s32.totalorder %s376, %s377
      %p388 = scmp.eq.s32.totalorder %s39, 0
      %p389 = por %p387, %p388
      %p390 = scmp.ne.s32.totalorder %s376, %s377
      %p391 = scmp.eq.s32.totalorder %s40, 1
      %p392 = por %p390, %p391
      %p394 = scmp.ne.s32.totalorder %s377, %s393
      %p395 = scmp.eq.s32.totalorder %s40, 0
      %p396 = por %p394, %p395
      %s397 = ssub.s32 %s34, %s41
      %p398 = scmp.eq.s32.totalorder %s397, 0
      %s400 = sadd.s32 %s399, 1
      %s401 = scalar_select %p398, %s399, %s400
      %p404 = pneg %p398
      %p405 = scmp.eq.s32.totalorder %s34, 1
      %p406 = por %p404, %p405
      %p407 = scmp.ne.s32.totalorder %s399, %s402
      %p408 = scmp.eq.s32.totalorder %s34, 0
      %p409 = por %p407, %p408
      %p410 = scmp.ne.s32.totalorder %s399, %s402
      %p411 = scmp.eq.s32.totalorder %s39, 1
      %p412 = por %p410, %p411
      %p413 = scmp.ne.s32.totalorder %s402, %s403
      %p414 = scmp.eq.s32.totalorder %s39, 0
      %p415 = por %p413, %p414
      %p416 = scmp.ne.s32.totalorder %s402, %s403
      %p417 = scmp.eq.s32.totalorder %s40, 1
      %p418 = por %p416, %p417
      %p420 = scmp.ne.s32.totalorder %s403, %s419
      %p421 = scmp.eq.s32.totalorder %s40, 0
      %p422 = por %p420, %p421
      %s423 = ssub.s32 %s34, %s41
      %p424 = scmp.eq.s32.totalorder %s423, 0
      %s426 = sadd.s32 %s425, 1
      %s427 = scalar_select %p424, %s425, %s426
      %p430 = pneg %p424
      %p431 = scmp.eq.s32.totalorder %s34, 1
      %p432 = por %p430, %p431
      %p433 = scmp.ne.s32.totalorder %s425, %s428
      %p434 = scmp.eq.s32.totalorder %s34, 0
      %p435 = por %p433, %p434
      %p436 = scmp.ne.s32.totalorder %s425, %s428
      %p437 = scmp.eq.s32.totalorder %s39, 1
      %p438 = por %p436, %p437
      %p439 = scmp.ne.s32.totalorder %s428, %s429
      %p440 = scmp.eq.s32.totalorder %s39, 0
      %p441 = por %p439, %p440
      %p442 = scmp.ne.s32.totalorder %s428, %s429
      %p443 = scmp.eq.s32.totalorder %s40, 1
      %p444 = por %p442, %p443
      %p446 = scmp.ne.s32.totalorder %s429, %s445
      %p447 = scmp.eq.s32.totalorder %s40, 0
      %p448 = por %p446, %p447
      %s449 = ssub.s32 %s34, %s41
      %p450 = scmp.eq.s32.totalorder %s449, 0
      %s452 = sadd.s32 %s451, 1
      %s453 = scalar_select %p450, %s451, %s452
      %p456 = pneg %p450
      %p457 = scmp.eq.s32.totalorder %s34, 1
      %p458 = por %p456, %p457
      %p459 = scmp.ne.s32.totalorder %s451, %s454
      %p460 = scmp.eq.s32.totalorder %s34, 0
      %p461 = por %p459, %p460
      %p462 = scmp.ne.s32.totalorder %s451, %s454
      %p463 = scmp.eq.s32.totalorder %s39, 1
      %p464 = por %p462, %p463
      %p465 = scmp.ne.s32.totalorder %s454, %s455
      %p466 = scmp.eq.s32.totalorder %s39, 0
      %p467 = por %p465, %p466
      %p468 = scmp.ne.s32.totalorder %s454, %s455
      %p469 = scmp.eq.s32.totalorder %s40, 1
      %p470 = por %p468, %p469
      %p472 = scmp.ne.s32.totalorder %s455, %s471
      %p473 = scmp.eq.s32.totalorder %s40, 0
      %p474 = por %p472, %p473
      %s475 = ssub.s32 %s34, %s41
      %p476 = scmp.eq.s32.totalorder %s475, 0
      %s478 = sadd.s32 %s477, 1
      %s479 = scalar_select %p476, %s477, %s478
      %p482 = pneg %p476
      %p483 = scmp.eq.s32.totalorder %s34, 1
      %p484 = por %p482, %p483
      %p485 = scmp.ne.s32.totalorder %s477, %s480
      %p486 = scmp.eq.s32.totalorder %s34, 0
      %p487 = por %p485, %p486
      %p488 = scmp.ne.s32.totalorder %s477, %s480
      %p489 = scmp.eq.s32.totalorder %s39, 1
      %p490 = por %p488, %p489
      %p491 = scmp.ne.s32.totalorder %s480, %s481
      %p492 = scmp.eq.s32.totalorder %s39, 0
      %p493 = por %p491, %p492
      %p494 = scmp.ne.s32.totalorder %s480, %s481
      %p495 = scmp.eq.s32.totalorder %s40, 1
      %p496 = por %p494, %p495
      %p498 = scmp.ne.s32.totalorder %s481, %s497
      %p499 = scmp.eq.s32.totalorder %s40, 0
      %p500 = por %p498, %p499
      %s502 = sadd.s32 %s501, 1
      %p505 = scmp.eq.s32.totalorder %s34, 1
      %p506 = scmp.ne.s32.totalorder %s501, %s503
      %p507 = scmp.eq.s32.totalorder %s34, 0
      %p508 = por %p506, %p507
      %p509 = scmp.ne.s32.totalorder %s501, %s503
      %p510 = scmp.eq.s32.totalorder %s39, 1
      %p511 = por %p509, %p510
      %p512 = scmp.ne.s32.totalorder %s503, %s504
      %p513 = scmp.eq.s32.totalorder %s39, 0
      %p514 = por %p512, %p513
      %p515 = scmp.ne.s32.totalorder %s503, %s504
      %p516 = scmp.eq.s32.totalorder %s40, 1
      %p517 = por %p515, %p516
      %p519 = scmp.ne.s32.totalorder %s504, %s518
      %p520 = scmp.eq.s32.totalorder %s40, 0
      %p521 = por %p519, %p520
      %s523 = sadd.s32 %s522, 1
      %p526 = scmp.eq.s32.totalorder %s34, 1
      %p527 = scmp.ne.s32.totalorder %s522, %s524
      %p528 = scmp.eq.s32.totalorder %s34, 0
      %p529 = por %p527, %p528
      %p530 = scmp.ne.s32.totalorder %s522, %s524
      %p531 = scmp.eq.s32.totalorder %s39, 1
      %p532 = por %p530, %p531
      %p533 = scmp.ne.s32.totalorder %s524, %s525
      %p534 = scmp.eq.s32.totalorder %s39, 0
      %p535 = por %p533, %p534
      %p536 = scmp.ne.s32.totalorder %s524, %s525
      %p537 = scmp.eq.s32.totalorder %s40, 1
      %p538 = por %p536, %p537
      %p540 = scmp.ne.s32.totalorder %s525, %s539
      %p541 = scmp.eq.s32.totalorder %s40, 0
      %p542 = por %p540, %p541
      %s544 = sadd.s32 %s543, 1
      %p547 = scmp.eq.s32.totalorder %s34, 1
      %p548 = scmp.ne.s32.totalorder %s543, %s545
      %p549 = scmp.eq.s32.totalorder %s34, 0
      %p550 = por %p548, %p549
      %p551 = scmp.ne.s32.totalorder %s543, %s545
      %p552 = scmp.eq.s32.totalorder %s39, 1
      %p553 = por %p551, %p552
      %p554 = scmp.ne.s32.totalorder %s545, %s546
      %p555 = scmp.eq.s32.totalorder %s39, 0
      %p556 = por %p554, %p555
      %p557 = scmp.ne.s32.totalorder %s545, %s546
      %p558 = scmp.eq.s32.totalorder %s40, 1
      %p559 = por %p557, %p558
      %p561 = scmp.ne.s32.totalorder %s546, %s560
      %p562 = scmp.eq.s32.totalorder %s40, 0
      %p563 = por %p561, %p562
      %s565 = sadd.s32 %s564, 1
      %p568 = scmp.eq.s32.totalorder %s34, 1
      %p569 = scmp.ne.s32.totalorder %s564, %s566
      %p570 = scmp.eq.s32.totalorder %s34, 0
      %p571 = por %p569, %p570
      %p572 = scmp.ne.s32.totalorder %s564, %s566
      %p573 = scmp.eq.s32.totalorder %s39, 1
      %p574 = por %p572, %p573
      %p575 = scmp.ne.s32.totalorder %s566, %s567
      %p576 = scmp.eq.s32.totalorder %s39, 0
      %p577 = por %p575, %p576
      %p578 = scmp.ne.s32.totalorder %s566, %s567
      %p579 = scmp.eq.s32.totalorder %s40, 1
      %p580 = por %p578, %p579
      %p582 = scmp.ne.s32.totalorder %s567, %s581
      %p583 = scmp.eq.s32.totalorder %s40, 0
      %p584 = por %p582, %p583
      %s586 = sadd.s32 %s585, 1
      %p589 = scmp.eq.s32.totalorder %s34, 1
      %p590 = scmp.ne.s32.totalorder %s585, %s587
      %p591 = scmp.eq.s32.totalorder %s34, 0
      %p592 = por %p590, %p591
      %p593 = scmp.ne.s32.totalorder %s585, %s587
      %p594 = scmp.eq.s32.totalorder %s39, 1
      %p595 = por %p593, %p594
      %p596 = scmp.ne.s32.totalorder %s587, %s588
      %p597 = scmp.eq.s32.totalorder %s39, 0
      %p598 = por %p596, %p597
      %p599 = scmp.ne.s32.totalorder %s587, %s588
      %p600 = scmp.eq.s32.totalorder %s40, 1
      %p601 = por %p599, %p600
      %p603 = scmp.ne.s32.totalorder %s588, %s602
      %p604 = scmp.eq.s32.totalorder %s40, 0
      %p605 = por %p603, %p604
      %s607 = sadd.s32 %s606, 1
      %p610 = scmp.eq.s32.totalorder %s34, 1
      %p611 = scmp.ne.s32.totalorder %s606, %s608
      %p612 = scmp.eq.s32.totalorder %s34, 0
      %p613 = por %p611, %p612
      %p614 = scmp.ne.s32.totalorder %s606, %s608
      %p615 = scmp.eq.s32.totalorder %s39, 1
      %p616 = por %p614, %p615
      %p617 = scmp.ne.s32.totalorder %s608, %s609
      %p618 = scmp.eq.s32.totalorder %s39, 0
      %p619 = por %p617, %p618
      %p620 = scmp.ne.s32.totalorder %s608, %s609
      %p621 = scmp.eq.s32.totalorder %s40, 1
      %p622 = por %p620, %p621
      %p624 = scmp.ne.s32.totalorder %s609, %s623
      %p625 = scmp.eq.s32.totalorder %s40, 0
      %p626 = por %p624, %p625
      %p627 = scmp.le.s32.totalorder 1, %s34
      %p628 = scmp.lt.s32.totalorder %s34, 3
      %p629 = pnand %p627, %p628
      %p630 = pneg %p629
      // Predicated region
      $region9: #{bleurt_forward.1} parent=5 // pred_check
        _
      $region10: #{bleurt_forward.1} parent=5 // pred_check_branch
        %632 = sbr.rel (%p629) target = $region12
      $region11: #{bleurt_forward.1} parent=5 // pred_region
        %s633 = ssub.s32 %s34, 1
        // Predicated region
        $region13: #{bleurt_forward.1} parent=11 // pred_check
          %p634 = pneg %p55
        $region14: #{bleurt_forward.1} parent=11 // pred_check_branch
          %636 = sbr.rel (%p634) target = $region16
        $region15: #{bleurt_forward.1} parent=11 // pred_region
          _
        $region16: #{bleurt_forward.1} parent=11 // pred_fallthru
          _
        // Predicated region
        $region17: #{bleurt_forward.1} parent=11 // pred_check
          %p637 = pneg %p76
        $region18: #{bleurt_forward.1} parent=11 // pred_check_branch
          %639 = sbr.rel (%p637) target = $region20
        $region19: #{bleurt_forward.1} parent=11 // pred_region
          _
        $region20: #{bleurt_forward.1} parent=11 // pred_fallthru
          _
        // Predicated region
        $region21: #{bleurt_forward.1} parent=11 // pred_check
          %p640 = pneg %p97
        $region22: #{bleurt_forward.1} parent=11 // pred_check_branch
          %642 = sbr.rel (%p640) target = $region24
        $region23: #{bleurt_forward.1} parent=11 // pred_region
          _
        $region24: #{bleurt_forward.1} parent=11 // pred_fallthru
          _
        // Predicated region
        $region25: #{bleurt_forward.1} parent=11 // pred_check
          %p643 = pneg %p118
        $region26: #{bleurt_forward.1} parent=11 // pred_check_branch
          %645 = sbr.rel (%p643) target = $region28
        $region27: #{bleurt_forward.1} parent=11 // pred_region
          _
        $region28: #{bleurt_forward.1} parent=11 // pred_fallthru
          _
        // Predicated region
        $region29: #{bleurt_forward.1} parent=11 // pred_check
          %p646 = pneg %p139
        $region30: #{bleurt_forward.1} parent=11 // pred_check_branch
          %648 = sbr.rel (%p646) target = $region32
        $region31: #{bleurt_forward.1} parent=11 // pred_region
          _
        $region32: #{bleurt_forward.1} parent=11 // pred_fallthru
          _
        // Predicated region
        $region33: #{bleurt_forward.1} parent=11 // pred_check
          %p649 = pneg %p160
        $region34: #{bleurt_forward.1} parent=11 // pred_check_branch
          %651 = sbr.rel (%p649) target = $region36
        $region35: #{bleurt_forward.1} parent=11 // pred_region
          _
        $region36: #{bleurt_forward.1} parent=11 // pred_fallthru
          _
        // Predicated region
        $region37: #{bleurt_forward.1} parent=11 // pred_check
          %p652 = pneg %p181
        $region38: #{bleurt_forward.1} parent=11 // pred_check_branch
          %654 = sbr.rel (%p652) target = $region40
        $region39: #{bleurt_forward.1} parent=11 // pred_region
          _
        $region40: #{bleurt_forward.1} parent=11 // pred_fallthru
          _
        // Predicated region
        $region41: #{bleurt_forward.1} parent=11 // pred_check
          %p655 = pneg %p514
        $region42: #{bleurt_forward.1} parent=11 // pred_check_branch
          %657 = sbr.rel (%p655) target = $region44
        $region43: #{bleurt_forward.1} parent=11 // pred_region
          _
        $region44: #{bleurt_forward.1} parent=11 // pred_fallthru
          _
        // Predicated region
        $region45: #{bleurt_forward.1} parent=11 // pred_check
          %p658 = pneg %p535
        $region46: #{bleurt_forward.1} parent=11 // pred_check_branch
          %660 = sbr.rel (%p658) target = $region48
        $region47: #{bleurt_forward.1} parent=11 // pred_region
          _
        $region48: #{bleurt_forward.1} parent=11 // pred_fallthru
          _
        // Predicated region
        $region49: #{bleurt_forward.1} parent=11 // pred_check
          %p661 = pneg %p556
        $region50: #{bleurt_forward.1} parent=11 // pred_check_branch
          %663 = sbr.rel (%p661) target = $region52
        $region51: #{bleurt_forward.1} parent=11 // pred_region
          _
        $region52: #{bleurt_forward.1} parent=11 // pred_fallthru
          _
        // Predicated region
        $region53: #{bleurt_forward.1} parent=11 // pred_check
          %p664 = pneg %p577
        $region54: #{bleurt_forward.1} parent=11 // pred_check_branch
          %666 = sbr.rel (%p664) target = $region56
        $region55: #{bleurt_forward.1} parent=11 // pred_region
          _
        $region56: #{bleurt_forward.1} parent=11 // pred_fallthru
          _
      $region12: #{bleurt_forward.1} parent=5 // pred_fallthru
        _
      %p667 = scmp.lt.s32.totalorder %s34, 2
      // Predicated region
      $region57: #{bleurt_forward.1} parent=5 // pred_check
        %p668 = pneg %p667
      $region58: #{bleurt_forward.1} parent=5 // pred_check_branch
        %670 = sbr.rel (%p668) target = $region60
      $region59: #{bleurt_forward.1} parent=5 // pred_region
        // Predicated region
        $region61: #{bleurt_forward.1} parent=59 // pred_check
          %p671 = pneg %p201
        $region62: #{bleurt_forward.1} parent=59 // pred_check_branch
          %673 = sbr.rel (%p671) target = $region64
        $region63: #{bleurt_forward.1} parent=59 // pred_region
          %p674 = scmp.lt.s32.totalorder %s34, 1
          %s675 = scalar_select %p674, %s34, 1
          %s676 = smul.addr %s675, 4
          %s677 = smul.addr %s676, 8
          %s678 = scalar_lea.vmem %s7, %s677
        $region64: #{bleurt_forward.1} parent=59 // pred_fallthru
          _
        // Predicated region
        $region65: #{bleurt_forward.1} parent=59 // pred_check
          %p679 = pneg %p227
        $region66: #{bleurt_forward.1} parent=59 // pred_check_branch
          %681 = sbr.rel (%p679) target = $region68
        $region67: #{bleurt_forward.1} parent=59 // pred_region
          %p682 = scmp.lt.s32.totalorder %s34, 1
          %s683 = scalar_select %p682, %s34, 1
          %s684 = scalar_lea.vmem %s8, %s683
        $region68: #{bleurt_forward.1} parent=59 // pred_fallthru
          _
        // Predicated region
        $region69: #{bleurt_forward.1} parent=59 // pred_check
          %p685 = pneg %p253
        $region70: #{bleurt_forward.1} parent=59 // pred_check_branch
          %687 = sbr.rel (%p685) target = $region72
        $region71: #{bleurt_forward.1} parent=59 // pred_region
          %p688 = scmp.lt.s32.totalorder %s34, 1
          %s689 = scalar_select %p688, %s34, 1
          %s690 = smul.addr %s689, 4
          %s691 = smul.addr %s690, 8
          %s692 = scalar_lea.vmem %s9, %s691
        $region72: #{bleurt_forward.1} parent=59 // pred_fallthru
          _
        // Predicated region
        $region73: #{bleurt_forward.1} parent=59 // pred_check
          %p693 = pneg %p279
        $region74: #{bleurt_forward.1} parent=59 // pred_check_branch
          %695 = sbr.rel (%p693) target = $region76
        $region75: #{bleurt_forward.1} parent=59 // pred_region
          %p696 = scmp.lt.s32.totalorder %s34, 1
          %s697 = scalar_select %p696, %s34, 1
          %s698 = scalar_lea.vmem %s10, %s697
        $region76: #{bleurt_forward.1} parent=59 // pred_fallthru
          _
        // Predicated region
        $region77: #{bleurt_forward.1} parent=59 // pred_check
          %p699 = pneg %p305
        $region78: #{bleurt_forward.1} parent=59 // pred_check_branch
          %701 = sbr.rel (%p699) target = $region80
        $region79: #{bleurt_forward.1} parent=59 // pred_region
          %p702 = scmp.lt.s32.totalorder %s34, 1
          %s703 = scalar_select %p702, %s34, 1
          %s704 = scalar_lea.vmem %s11, %s703
        $region80: #{bleurt_forward.1} parent=59 // pred_fallthru
          _
        // Predicated region
        $region81: #{bleurt_forward.1} parent=59 // pred_check
          %p705 = pneg %p331
        $region82: #{bleurt_forward.1} parent=59 // pred_check_branch
          %707 = sbr.rel (%p705) target = $region84
        $region83: #{bleurt_forward.1} parent=59 // pred_region
          %p708 = scmp.lt.s32.totalorder %s34, 1
          %s709 = scalar_select %p708, %s34, 1
          %s710 = scalar_lea.vmem %s12, %s709
        $region84: #{bleurt_forward.1} parent=59 // pred_fallthru
          _
        // Predicated region
        $region85: #{bleurt_forward.1} parent=59 // pred_check
          %p711 = pneg %p357
        $region86: #{bleurt_forward.1} parent=59 // pred_check_branch
          %713 = sbr.rel (%p711) target = $region88
        $region87: #{bleurt_forward.1} parent=59 // pred_region
          %p714 = scmp.lt.s32.totalorder %s34, 1
          %s715 = scalar_select %p714, %s34, 1
          %s716 = smul.addr %s715, 4
          %s717 = smul.addr %s716, 8
          %s718 = scalar_lea.vmem %s13, %s717
        $region88: #{bleurt_forward.1} parent=59 // pred_fallthru
          _
        // Predicated region
        $region89: #{bleurt_forward.1} parent=59 // pred_check
          %p719 = pneg %p383
        $region90: #{bleurt_forward.1} parent=59 // pred_check_branch
          %721 = sbr.rel (%p719) target = $region92
        $region91: #{bleurt_forward.1} parent=59 // pred_region
          %p722 = scmp.lt.s32.totalorder %s34, 1
          %s723 = scalar_select %p722, %s34, 1
          %s724 = scalar_lea.vmem %s14, %s723
        $region92: #{bleurt_forward.1} parent=59 // pred_fallthru
          _
        // Predicated region
        $region93: #{bleurt_forward.1} parent=59 // pred_check
          %p725 = pneg %p409
        $region94: #{bleurt_forward.1} parent=59 // pred_check_branch
          %727 = sbr.rel (%p725) target = $region96
        $region95: #{bleurt_forward.1} parent=59 // pred_region
          %p728 = scmp.lt.s32.totalorder %s34, 1
          %s729 = scalar_select %p728, %s34, 1
          %s730 = smul.addr %s729, 8
          %s731 = smul.addr %s730, 8
          %s732 = scalar_lea.vmem %s15, %s731
        $region96: #{bleurt_forward.1} parent=59 // pred_fallthru
          _
        // Predicated region
        $region97: #{bleurt_forward.1} parent=59 // pred_check
          %p733 = pneg %p435
        $region98: #{bleurt_forward.1} parent=59 // pred_check_branch
          %735 = sbr.rel (%p733) target = $region100
        $region99: #{bleurt_forward.1} parent=59 // pred_region
          %p736 = scmp.lt.s32.totalorder %s34, 1
          %s737 = scalar_select %p736, %s34, 1
          %s738 = scalar_lea.vmem %s16, %s737
        $region100: #{bleurt_forward.1} parent=59 // pred_fallthru
          _
        // Predicated region
        $region101: #{bleurt_forward.1} parent=59 // pred_check
          %p739 = pneg %p461
        $region102: #{bleurt_forward.1} parent=59 // pred_check_branch
          %741 = sbr.rel (%p739) target = $region104
        $region103: #{bleurt_forward.1} parent=59 // pred_region
          %p742 = scmp.lt.s32.totalorder %s34, 1
          %s743 = scalar_select %p742, %s34, 1
          %s744 = scalar_lea.vmem %s17, %s743
        $region104: #{bleurt_forward.1} parent=59 // pred_fallthru
          _
        // Predicated region
        $region105: #{bleurt_forward.1} parent=59 // pred_check
          %p745 = pneg %p487
        $region106: #{bleurt_forward.1} parent=59 // pred_check_branch
          %747 = sbr.rel (%p745) target = $region108
        $region107: #{bleurt_forward.1} parent=59 // pred_region
          %p748 = scmp.lt.s32.totalorder %s34, 1
          %s749 = scalar_select %p748, %s34, 1
          %s750 = scalar_lea.vmem %s18, %s749
        $region108: #{bleurt_forward.1} parent=59 // pred_fallthru
          _
      $region60: #{bleurt_forward.1} parent=5 // pred_fallthru
        _
      %p751 = scmp.le.s32.totalorder 1, %s34
      %p752 = scmp.lt.s32.totalorder %s34, 3
      %p753 = pnand %p751, %p752
      %p754 = pneg %p753
      // Predicated region
      $region109: #{bleurt_forward.1} parent=5 // pred_check
        _
      $region110: #{bleurt_forward.1} parent=5 // pred_check_branch
        %756 = sbr.rel (%p753) target = $region112
      $region111: #{bleurt_forward.1} parent=5 // pred_region
        %s757 = ssub.s32 %s34, 1
        %p758 = pneg %p55
        %p759 = pneg %p52
        %p760 = pneg %p76
        %p761 = pneg %p73
        %p762 = pneg %p97
        %p763 = pneg %p94
        %p764 = pneg %p118
        %p765 = pneg %p115
        %p766 = pneg %p139
        %p767 = pneg %p136
        %p768 = pneg %p160
        %p769 = pneg %p157
        %p770 = pneg %p181
        %p771 = pneg %p178
        %p772 = scmp.lt.s32.totalorder %s39, 1
        %s773 = scalar_select %p772, %s39, 1
        %s774 = smul.addr %s773, 4
        %s775 = smul.addr %s774, 8
        %s776 = scalar_lea.vmem %s7, %s775
        %p777 = pneg %p207
        %p778 = pneg %p204
        %p779 = scmp.lt.s32.totalorder %s39, 1
        %s780 = scalar_select %p779, %s39, 1
        %s781 = scalar_lea.vmem %s8, %s780
        %p782 = pneg %p233
        %p783 = pneg %p230
        %p784 = scmp.lt.s32.totalorder %s39, 1
        %s785 = scalar_select %p784, %s39, 1
        %s786 = smul.addr %s785, 4
        %s787 = smul.addr %s786, 8
        %s788 = scalar_lea.vmem %s9, %s787
        %p789 = pneg %p259
        %p790 = pneg %p256
        %p791 = scmp.lt.s32.totalorder %s39, 1
        %s792 = scalar_select %p791, %s39, 1
        %s793 = scalar_lea.vmem %s10, %s792
        %p794 = pneg %p285
        %p795 = pneg %p282
        %p796 = scmp.lt.s32.totalorder %s39, 1
        %s797 = scalar_select %p796, %s39, 1
        %s798 = scalar_lea.vmem %s11, %s797
        %p799 = pneg %p311
        %p800 = pneg %p308
        %p801 = scmp.lt.s32.totalorder %s39, 1
        %s802 = scalar_select %p801, %s39, 1
        %s803 = scalar_lea.vmem %s12, %s802
        %p804 = pneg %p337
        %p805 = pneg %p334
        %p806 = scmp.lt.s32.totalorder %s39, 1
        %s807 = scalar_select %p806, %s39, 1
        %s808 = smul.addr %s807, 4
        %s809 = smul.addr %s808, 8
        %s810 = scalar_lea.vmem %s13, %s809
        %p811 = pneg %p363
        %p812 = pneg %p360
        %p813 = scmp.lt.s32.totalorder %s39, 1
        %s814 = scalar_select %p813, %s39, 1
        %s815 = scalar_lea.vmem %s14, %s814
        %p816 = pneg %p389
        %p817 = pneg %p386
        %p818 = scmp.lt.s32.totalorder %s39, 1
        %s819 = scalar_select %p818, %s39, 1
        %s820 = smul.addr %s819, 8
        %s821 = smul.addr %s820, 8
        %s822 = scalar_lea.vmem %s15, %s821
        %p823 = pneg %p415
        %p824 = pneg %p412
        %p825 = scmp.lt.s32.totalorder %s39, 1
        %s826 = scalar_select %p825, %s39, 1
        %s827 = scalar_lea.vmem %s16, %s826
        %p828 = pneg %p441
        %p829 = pneg %p438
        %p830 = scmp.lt.s32.totalorder %s39, 1
        %s831 = scalar_select %p830, %s39, 1
        %s832 = scalar_lea.vmem %s17, %s831
        %p833 = pneg %p467
        %p834 = pneg %p464
        %p835 = scmp.lt.s32.totalorder %s39, 1
        %s836 = scalar_select %p835, %s39, 1
        %s837 = scalar_lea.vmem %s18, %s836
        %p838 = pneg %p493
        %p839 = pneg %p490
        %p840 = pneg %p514
        %p841 = pneg %p511
        %p842 = pneg %p535
        %p843 = pneg %p532
        %p844 = pneg %p556
        %p845 = pneg %p553
        %p846 = pneg %p577
        %p847 = pneg %p574
        %p848 = pneg %p598
        %p849 = pneg %p595
        %p850 = pneg %p619
        %p851 = pneg %p616
        %p852 = scmp.lt.s32.totalorder %s39, 1
        %s853 = scalar_select %p852, %s39, 1
        %s854 = smul.addr %s853, 4
        %s855 = smul.addr %s854, 8
        %s856 = scalar_lea.vmem %s7, %s855
        %p857 = scmp.lt.s32.totalorder %s39, 1
        %s858 = scalar_select %p857, %s39, 1
        %s859 = scalar_lea.vmem %s8, %s858
        %p860 = scmp.lt.s32.totalorder %s39, 1
        %s861 = scalar_select %p860, %s39, 1
        %s862 = smul.addr %s861, 4
        %s863 = smul.addr %s862, 8
        %s864 = scalar_lea.vmem %s9, %s863
        %p865 = scmp.lt.s32.totalorder %s39, 1
        %s866 = scalar_select %p865, %s39, 1
        %s867 = scalar_lea.vmem %s10, %s866
        %p868 = scmp.lt.s32.totalorder %s39, 1
        %s869 = scalar_select %p868, %s39, 1
        %s870 = scalar_lea.vmem %s11, %s869
        %p871 = scmp.lt.s32.totalorder %s39, 1
        %s872 = scalar_select %p871, %s39, 1
        %s873 = scalar_lea.vmem %s12, %s872
        %p874 = scmp.lt.s32.totalorder %s39, 1
        %s875 = scalar_select %p874, %s39, 1
        %s876 = smul.addr %s875, 4
        %s877 = smul.addr %s876, 8
        %s878 = scalar_lea.vmem %s13, %s877
        %p879 = scmp.lt.s32.totalorder %s39, 1
        %s880 = scalar_select %p879, %s39, 1
        %s881 = scalar_lea.vmem %s14, %s880
        %p882 = scmp.lt.s32.totalorder %s39, 1
        %s883 = scalar_select %p882, %s39, 1
        %s884 = smul.addr %s883, 8
        %s885 = smul.addr %s884, 8
        %s886 = scalar_lea.vmem %s15, %s885
        %p887 = scmp.lt.s32.totalorder %s39, 1
        %s888 = scalar_select %p887, %s39, 1
        %s889 = scalar_lea.vmem %s16, %s888
        %p890 = scmp.lt.s32.totalorder %s39, 1
        %s891 = scalar_select %p890, %s39, 1
        %s892 = scalar_lea.vmem %s17, %s891
        %p893 = scmp.lt.s32.totalorder %s39, 1
        %s894 = scalar_select %p893, %s39, 1
        %s895 = scalar_lea.vmem %s18, %s894
        %p896 = scmp.eq.s32.totalorder %s39, 0
        // Predicated region
        $region113: #{bleurt_forward.1} parent=111 // pred_check
          %p897 = pneg %p896
        $region114: #{bleurt_forward.1} parent=111 // pred_check_branch
          %899 = sbr.rel (%p897) target = $region116
        $region115: #{bleurt_forward.1} parent=111 // pred_region
          %v900 = vld [vmem:[%s0] sm:$0xff]
          %v901 = vld [vmem:[%s0 + $0x8] sm:$0xff]
          %v902 = vld [vmem:[%s1] sm:$0xff]
          %v903 = vld [vmem:[%s1 + $0x8] sm:$0xff]
          %v904 = vadd.f32 %v900, %v902
          %v905 = vadd.f32 %v901, %v903
          %v906 = vld [vmem:[%s2] sm:$0xff]
          %v907 = vadd.f32 %v904, %v906
          %v908 = vadd.f32 %v905, %v906
          %v909 = vld [vmem:[%s3] sm:$0x1]
          %v910 = vld [vmem:[%s4] sm:$0x1]
          %vm911 = vcmask 261120
          %v912 = vsel %vm911, %v907, 0.0
          %913 = vadd.xlane.f32.xlu0 %v912
          %v914 = vpop.xlane.xlu0 %913
          %v915 = vsel %vm911, %v908, 0.0
          %916 = vadd.xlane.f32.xlu0 %v915
          %v917 = vpop.xlane.xlu0 %916
          %v918 = vrcp.pop 32.0
          %v919 = vmul.f32 %v914, %v918
          %v920 = vmul.f32 %v917, %v918
          %v921 = vsub.f32 %v907, %v919
          %v922 = vsub.f32 %v908, %v920
          %v923 = vmul.f32 %v921, %v921
          %v924 = vmul.f32 %v922, %v922
          %v925 = vsel %vm911, %v923, 0.0
          %926 = vadd.xlane.f32.xlu0 %v925
          %v927 = vpop.xlane.xlu0 %926
          %v928 = vsel %vm911, %v924, 0.0
          %929 = vadd.xlane.f32.xlu0 %v928
          %v930 = vpop.xlane.xlu0 %929
          %v931 = vmul.f32 %v927, %v918
          %v932 = vmul.f32 %v930, %v918
          %v933 = vadd.f32 %v931, 1e-12
          %v934 = vadd.f32 %v932, 1e-12
          %v935 = vrsqrt.pop %v933
          %v936 = vrsqrt.pop %v934
          %v937 = vmul.f32 %v921, %v935
          %v938 = vmul.f32 %v922, %v936
          %v940 = vlaneseq
          %v941 = vshrl.u32 %v940, 7
          %v942 = vsub.s32 0, %v941
          %v943 = vrot.slane %v909, %v942
          %v945 = vmul.f32 %v937, %v943
          %v946 = vmul.f32 %v938, %v943
          %v948 = vlaneseq
          %v949 = vshrl.u32 %v948, 7
          %v950 = vsub.s32 0, %v949
          %v951 = vrot.slane %v910, %v950
          %v953 = vadd.f32 %v945, %v951
          %v954 = vadd.f32 %v946, %v951
          %955 = vst.msk [vmem:[#allocation2] sm:$0xff] %vm911, %v953
          %956 = vst.msk [vmem:[#allocation2 + $0x8] sm:$0xff] %vm911, %v954
        $region116: #{bleurt_forward.1} parent=111 // pred_fallthru
          _
        %v957 = vld [vmem:[#allocation2] sm:$0xff]
        %v958 = vld [vmem:[#allocation2 + $0x8] sm:$0xff]
        %v959 = vld [vmem:[%s856] sm:$0xff]
        %v960 = vld [vmem:[%s856 + $0x8] sm:$0xff]
        %v961 = vld [vmem:[%s856 + $0x10] sm:$0xff]
        %v962 = vld [vmem:[%s856 + $0x18] sm:$0xff]
        %v963 = vld [vmem:[%s859] sm:$0x1]
        %v965 = vlaneseq
        %v966 = vshrl.u32 %v965, 7
        %v967 = vsub.s32 0, %v966
        %v968 = vrot.slane %v963, %v967
        %vm970 = vcmask 261120
        %v972 = vsel %vm970, %v957, 0
        %v975 = vsel %vm970, %v958, 0
        %977 = vmatprep.subr.mxu0 0.0
        %978 = vmatpush1.msra.mxu0 %v959
        %979 = vmatprep.subr.mxu0 0.0
        %980 = vmatpush1.msra.mxu0 %v960
        %981 = vmatprep.subr.mxu0 0.0
        %982 = vmatpush1.msra.mxu0 %v961
        %983 = vmatprep.subr.mxu0 0.0
        %984 = vmatpush1.msra.mxu0 %v962
        %985 = vmatprep.subr.mxu0 0.0
        %986 = vmatpush1.msra.mxu0 0.0
        %987 = vmatprep.subr.mxu0 0.0
        %988 = vmatpush1.msra.mxu0 0.0
        %989 = vmatprep.subr.mxu0 0.0
        %990 = vmatpush1.msra.mxu0 0.0
        %991 = vmatprep.subr.mxu0 0.0
        %992 = vmatpush1.msra.mxu0 0.0
        %993 = vmatprep.subr.mxu0 0.0
        %994 = vmatpush1.msra.mxu0 0.0
        %995 = vmatprep.subr.mxu0 0.0
        %996 = vmatpush1.msra.mxu0 0.0
        %997 = vmatprep.subr.mxu0 0.0
        %998 = vmatpush1.msra.mxu0 0.0
        %999 = vmatprep.subr.mxu0 0.0
        %1000 = vmatpush1.msra.mxu0 0.0
        %1001 = vmatprep.subr.mxu0 0.0
        %1002 = vmatpush1.msra.mxu0 0.0
        %1003 = vmatprep.subr.mxu0 0.0
        %1004 = vmatpush1.msra.mxu0 0.0
        %1005 = vmatprep.subr.mxu0 0.0
        %1006 = vmatpush1.msra.mxu0 0.0
        %1007 = vmatprep.subr.mxu0 0.0
        %1008 = vmatpush1.msra.mxu0 0.0
        %1009 = vmatprep.subr.mxu0 0.0
        %1010 = vmatpush1.msra.mxu0 0.0
        %1011 = vmatprep.subr.mxu0 0.0
        %1012 = vmatpush1.msra.mxu0 0.0
        %1013 = vmatprep.subr.mxu0 0.0
        %1014 = vmatpush1.msra.mxu0 0.0
        %1015 = vmatprep.subr.mxu0 0.0
        %1016 = vmatpush1.msra.mxu0 0.0
        %1017 = vmatprep.subr.mxu0 0.0
        %1018 = vmatpush1.msra.mxu0 0.0
        %1019 = vmatprep.subr.mxu0 0.0
        %1020 = vmatpush1.msra.mxu0 0.0
        %1021 = vmatprep.subr.mxu0 0.0
        %1022 = vmatpush1.msra.mxu0 0.0
        %1023 = vmatprep.subr.mxu0 0.0
        %1024 = vmatpush1.msra.mxu0 0.0
        %1025 = vmatprep.subr.mxu0 0.0
        %1026 = vmatpush1.msra.mxu0 0.0
        %1027 = vmatprep.subr.mxu0 0.0
        %1028 = vmatpush1.msra.mxu0 0.0
        %1029 = vmatprep.subr.mxu0 0.0
        %1030 = vmatpush1.msra.mxu0 0.0
        %1031 = vmatprep.subr.mxu0 0.0
        %1032 = vmatpush1.msra.mxu0 0.0
        %1033 = vmatprep.subr.mxu0 0.0
        %1034 = vmatpush1.msra.mxu0 0.0
        %1035 = vmatprep.subr.mxu0 0.0
        %1036 = vmatpush1.msra.mxu0 0.0
        %1037 = vmatprep.subr.mxu0 0.0
        %1038 = vmatpush1.msra.mxu0 0.0
        %1039 = vmatprep.subr.mxu0 0.0
        %1040 = vmatpush1.msra.mxu0 0.0
        %1041 = vmatprep.mubr.f32.mxu0 0.0
        %1042 = vmatmul.mubr.f32.gmra.mrb[0].mxu0 %v972
        %v1043 = vpop.f32.mrb[0].mxu0
        %v1044 = vadd.f32 %v968, %v1043
        %v1045 = vpop.f32.mrb[0].mxu0
        %1046 = vmatprep.mubr.f32.mxu0 0.0
        %1047 = vmatmul.mubr.f32.gmra.mrb[0].mxu0 %v975
        %v1048 = vpop.f32.mrb[0].mxu0
        %v1049 = vadd.f32 %v968, %v1048
        %v1050 = vpop.f32.mrb[0].mxu0
        %1051 = vdwg.mxu0
        %v1052 = vld [vmem:[%s5] sm:$0x1]
        %v1053 = vld [vmem:[%s5 + $0x1] sm:$0x1]
        %1055 = vrot.lane.b32.xlu0 %v1044, 96
        %v1056 = vpop.permute.xlu0 %1055
        %vm1057 = vcmask 130048
        %v1058 = vsel %vm1057, %v1044, 0
        %v1060 = vsel %vm1057, %v1056, 0
        %1062 = vmatprep.subr.mxu0 0.0
        %1063 = vmatpush1.xpose.msra.mxu0 %v1060
        %1064 = vmatprep.subr.mxu0 0.0
        %1065 = vmatpush1.xpose.msra.mxu0 0.0
        %1066 = vmatprep.subr.mxu0 0.0
        %1067 = vmatpush1.xpose.msra.mxu0 0.0
        %1068 = vmatprep.subr.mxu0 0.0
        %1069 = vmatpush1.xpose.msra.mxu0 0.0
        %1070 = vmatprep.subr.mxu0 0.0
        %1071 = vmatpush1.xpose.msra.mxu0 0.0
        %1072 = vmatprep.subr.mxu0 0.0
        %1073 = vmatpush1.xpose.msra.mxu0 0.0
        %1074 = vmatprep.subr.mxu0 0.0
        %1075 = vmatpush1.xpose.msra.mxu0 0.0
        %1076 = vmatprep.subr.mxu0 0.0
        %1077 = vmatpush1.xpose.msra.mxu0 0.0
        %1078 = vmatprep.subr.mxu0 0.0
        %1079 = vmatpush1.xpose.msra.mxu0 0.0
        %1080 = vmatprep.subr.mxu0 0.0
        %1081 = vmatpush1.xpose.msra.mxu0 0.0
        %1082 = vmatprep.subr.mxu0 0.0
        %1083 = vmatpush1.xpose.msra.mxu0 0.0
        %1084 = vmatprep.subr.mxu0 0.0
        %1085 = vmatpush1.xpose.msra.mxu0 0.0
        %1086 = vmatprep.subr.mxu0 0.0
        %1087 = vmatpush1.xpose.msra.mxu0 0.0
        %1088 = vmatprep.subr.mxu0 0.0
        %1089 = vmatpush1.xpose.msra.mxu0 0.0
        %1090 = vmatprep.subr.mxu0 0.0
        %1091 = vmatpush1.xpose.msra.mxu0 0.0
        %1092 = vmatprep.subr.mxu0 0.0
        %1093 = vmatpush1.xpose.msra.mxu0 0.0
        %1094 = vmatprep.subr.mxu0 0.0
        %1095 = vmatpush1.xpose.msra.mxu0 0.0
        %1096 = vmatprep.subr.mxu0 0.0
        %1097 = vmatpush1.xpose.msra.mxu0 0.0
        %1098 = vmatprep.subr.mxu0 0.0
        %1099 = vmatpush1.xpose.msra.mxu0 0.0
        %1100 = vmatprep.subr.mxu0 0.0
        %1101 = vmatpush1.xpose.msra.mxu0 0.0
        %1102 = vmatprep.subr.mxu0 0.0
        %1103 = vmatpush1.xpose.msra.mxu0 0.0
        %1104 = vmatprep.subr.mxu0 0.0
        %1105 = vmatpush1.xpose.msra.mxu0 0.0
        %1106 = vmatprep.subr.mxu0 0.0
        %1107 = vmatpush1.xpose.msra.mxu0 0.0
        %1108 = vmatprep.subr.mxu0 0.0
        %1109 = vmatpush1.xpose.msra.mxu0 0.0
        %1110 = vmatprep.subr.mxu0 0.0
        %1111 = vmatpush1.xpose.msra.mxu0 0.0
        %1112 = vmatprep.subr.mxu0 0.0
        %1113 = vmatpush1.xpose.msra.mxu0 0.0
        %1114 = vmatprep.subr.mxu0 0.0
        %1115 = vmatpush1.xpose.msra.mxu0 0.0
        %1116 = vmatprep.subr.mxu0 0.0
        %1117 = vmatpush1.xpose.msra.mxu0 0.0
        %1118 = vmatprep.subr.mxu0 0.0
        %1119 = vmatpush1.xpose.msra.mxu0 0.0
        %1120 = vmatprep.subr.mxu0 0.0
        %1121 = vmatpush1.xpose.msra.mxu0 0.0
        %1122 = vmatprep.subr.mxu0 0.0
        %1123 = vmatpush1.xpose.msra.mxu0 0.0
        %1124 = vmatprep.subr.mxu0 0.0
        %1125 = vmatpush1.xpose.msra.mxu0 0.0
        %1126 = vmatprep.mubr.f32.mxu0 0.0
        %1127 = vmatmul.mubr.f32.gmra.mrb[0].mxu0 %v1058
        %v1128 = vpop.f32.mrb[0].mxu0
        %v1129 = vadd.f32 0.0, %v1128
        %v1130 = vpop.f32.mrb[0].mxu0
        %1131 = vdwg.mxu0
        %1133 = vrot.lane.b32.xlu0 %v1049, 96
        %v1134 = vpop.permute.xlu0 %1133
        %v1135 = vsel %vm1057, %v1049, 0
        %v1137 = vsel %vm1057, %v1134, 0
        %1139 = vmatprep.subr.mxu0 0.0
        %1140 = vmatpush1.xpose.msra.mxu0 %v1137
        %1141 = vmatprep.subr.mxu0 0.0
        %1142 = vmatpush1.xpose.msra.mxu0 0.0
        %1143 = vmatprep.subr.mxu0 0.0
        %1144 = vmatpush1.xpose.msra.mxu0 0.0
        %1145 = vmatprep.subr.mxu0 0.0
        %1146 = vmatpush1.xpose.msra.mxu0 0.0
        %1147 = vmatprep.subr.mxu0 0.0
        %1148 = vmatpush1.xpose.msra.mxu0 0.0
        %1149 = vmatprep.subr.mxu0 0.0
        %1150 = vmatpush1.xpose.msra.mxu0 0.0
        %1151 = vmatprep.subr.mxu0 0.0
        %1152 = vmatpush1.xpose.msra.mxu0 0.0
        %1153 = vmatprep.subr.mxu0 0.0
        %1154 = vmatpush1.xpose.msra.mxu0 0.0
        %1155 = vmatprep.subr.mxu0 0.0
        %1156 = vmatpush1.xpose.msra.mxu0 0.0
        %1157 = vmatprep.subr.mxu0 0.0
        %1158 = vmatpush1.xpose.msra.mxu0 0.0
        %1159 = vmatprep.subr.mxu0 0.0
        %1160 = vmatpush1.xpose.msra.mxu0 0.0
        %1161 = vmatprep.subr.mxu0 0.0
        %1162 = vmatpush1.xpose.msra.mxu0 0.0
        %1163 = vmatprep.subr.mxu0 0.0
        %1164 = vmatpush1.xpose.msra.mxu0 0.0
        %1165 = vmatprep.subr.mxu0 0.0
        %1166 = vmatpush1.xpose.msra.mxu0 0.0
        %1167 = vmatprep.subr.mxu0 0.0
        %1168 = vmatpush1.xpose.msra.mxu0 0.0
        %1169 = vmatprep.subr.mxu0 0.0
        %1170 = vmatpush1.xpose.msra.mxu0 0.0
        %1171 = vmatprep.subr.mxu0 0.0
        %1172 = vmatpush1.xpose.msra.mxu0 0.0
        %1173 = vmatprep.subr.mxu0 0.0
        %1174 = vmatpush1.xpose.msra.mxu0 0.0
        %1175 = vmatprep.subr.mxu0 0.0
        %1176 = vmatpush1.xpose.msra.mxu0 0.0
        %1177 = vmatprep.subr.mxu0 0.0
        %1178 = vmatpush1.xpose.msra.mxu0 0.0
        %1179 = vmatprep.subr.mxu0 0.0
        %1180 = vmatpush1.xpose.msra.mxu0 0.0
        %1181 = vmatprep.subr.mxu0 0.0
        %1182 = vmatpush1.xpose.msra.mxu0 0.0
        %1183 = vmatprep.subr.mxu0 0.0
        %1184 = vmatpush1.xpose.msra.mxu0 0.0
        %1185 = vmatprep.subr.mxu0 0.0
        %1186 = vmatpush1.xpose.msra.mxu0 0.0
        %1187 = vmatprep.subr.mxu0 0.0
        %1188 = vmatpush1.xpose.msra.mxu0 0.0
        %1189 = vmatprep.subr.mxu0 0.0
        %1190 = vmatpush1.xpose.msra.mxu0 0.0
        %1191 = vmatprep.subr.mxu0 0.0
        %1192 = vmatpush1.xpose.msra.mxu0 0.0
        %1193 = vmatprep.subr.mxu0 0.0
        %1194 = vmatpush1.xpose.msra.mxu0 0.0
        %1195 = vmatprep.subr.mxu0 0.0
        %1196 = vmatpush1.xpose.msra.mxu0 0.0
        %1197 = vmatprep.subr.mxu0 0.0
        %1198 = vmatpush1.xpose.msra.mxu0 0.0
        %1199 = vmatprep.subr.mxu0 0.0
        %1200 = vmatpush1.xpose.msra.mxu0 0.0
        %1201 = vmatprep.subr.mxu0 0.0
        %1202 = vmatpush1.xpose.msra.mxu0 0.0
        %1203 = vmatprep.mubr.f32.mxu0 0.0
        %1204 = vmatmul.mubr.f32.gmra.mrb[0].mxu0 %v1135
        %v1205 = vpop.f32.mrb[0].mxu0
        %v1206 = vadd.f32 0.0, %v1205
        %v1207 = vpop.f32.mrb[0].mxu0
        %1208 = vdwg.mxu0
        %v1209 = vmul.f32 %v1129, 0.25
        %v1210 = vmul.f32 %v1206, 0.25
        %v1213 = vlaneseq
        %v1214 = vshrl.u32 %v1213, 7
        %v1215 = vsub.s32 0, %v1214
        %v1216 = vrot.slane %v1052, %v1215
        %v1217 = vlaneseq
        %v1218 = vshrl.u32 %v1217, 7
        %v1219 = vsub.s32 0, %v1218
        %v1220 = vrot.slane %v1053, %v1219
        %v1223 = vadd.f32 %v1209, %v1216
        %v1224 = vadd.f32 %v1210, %v1220
        %vm1225 = vcmask 64512
        %v1226 = vsel %vm1225, %v1223, -inf
        %1227 = vmax.xlane.f32.xlu0 %v1226
        %v1228 = vpop.xlane.xlu0 %1227
        %v1229 = vsel %vm1225, %v1224, -inf
        %1230 = vmax.xlane.f32.xlu0 %v1229
        %v1231 = vpop.xlane.xlu0 %1230
        %v1232 = vsub.f32 %v1223, %v1228
        %v1233 = vsub.f32 %v1224, %v1231
        %v1234 = vmul.f32 %v1232, 1.442695
        %v1235 = vpow.pop %v1234
        %v1236 = vmul.f32 %v1233, 1.442695
        %v1237 = vpow.pop %v1236
        %v1238 = vsel %vm1225, %v1235, 0.0
        %1239 = vadd.xlane.f32.xlu0 %v1238
        %v1240 = vpop.xlane.xlu0 %1239
        %v1241 = vsel %vm1225, %v1237, 0.0
        %1242 = vadd.xlane.f32.xlu0 %v1241
        %v1243 = vpop.xlane.xlu0 %1242
        %v1244 = vrcp.pop %v1240
        %v1245 = vmul.f32 %v1235, %v1244
        %v1246 = vrcp.pop %v1243
        %v1247 = vmul.f32 %v1237, %v1246
        %1248 = vrot.lane.b32.xlu0 %v1044, 64
        %v1249 = vpop.permute.xlu0 %1248
        %v1252 = vsel %vm1225, %v1245, 0
        %1254 = vmatprep.subr.mxu0 0.0
        %1255 = vmatpush1.msra.mxu0 %v1249
        %1256 = vmatprep.subr.mxu0 0.0
        %1257 = vmatpush1.msra.mxu0 0.0
        %1258 = vmatprep.subr.mxu0 0.0
        %1259 = vmatpush1.msra.mxu0 0.0
        %1260 = vmatprep.subr.mxu0 0.0
        %1261 = vmatpush1.msra.mxu0 0.0
        %1262 = vmatprep.subr.mxu0 0.0
        %1263 = vmatpush1.msra.mxu0 0.0
        %1264 = vmatprep.subr.mxu0 0.0
        %1265 = vmatpush1.msra.mxu0 0.0
        %1266 = vmatprep.subr.mxu0 0.0
        %1267 = vmatpush1.msra.mxu0 0.0
        %1268 = vmatprep.subr.mxu0 0.0
        %1269 = vmatpush1.msra.mxu0 0.0
        %1270 = vmatprep.subr.mxu0 0.0
        %1271 = vmatpush1.msra.mxu0 0.0
        %1272 = vmatprep.subr.mxu0 0.0
        %1273 = vmatpush1.msra.mxu0 0.0
        %1274 = vmatprep.subr.mxu0 0.0
        %1275 = vmatpush1.msra.mxu0 0.0
        %1276 = vmatprep.subr.mxu0 0.0
        %1277 = vmatpush1.msra.mxu0 0.0
        %1278 = vmatprep.subr.mxu0 0.0
        %1279 = vmatpush1.msra.mxu0 0.0
        %1280 = vmatprep.subr.mxu0 0.0
        %1281 = vmatpush1.msra.mxu0 0.0
        %1282 = vmatprep.subr.mxu0 0.0
        %1283 = vmatpush1.msra.mxu0 0.0
        %1284 = vmatprep.subr.mxu0 0.0
        %1285 = vmatpush1.msra.mxu0 0.0
        %1286 = vmatprep.subr.mxu0 0.0
        %1287 = vmatpush1.msra.mxu0 0.0
        %1288 = vmatprep.subr.mxu0 0.0
        %1289 = vmatpush1.msra.mxu0 0.0
        %1290 = vmatprep.subr.mxu0 0.0
        %1291 = vmatpush1.msra.mxu0 0.0
        %1292 = vmatprep.subr.mxu0 0.0
        %1293 = vmatpush1.msra.mxu0 0.0
        %1294 = vmatprep.subr.mxu0 0.0
        %1295 = vmatpush1.msra.mxu0 0.0
        %1296 = vmatprep.subr.mxu0 0.0
        %1297 = vmatpush1.msra.mxu0 0.0
        %1298 = vmatprep.subr.mxu0 0.0
        %1299 = vmatpush1.msra.mxu0 0.0
        %1300 = vmatprep.subr.mxu0 0.0
        %1301 = vmatpush1.msra.mxu0 0.0
        %1302 = vmatprep.subr.mxu0 0.0
        %1303 = vmatpush1.msra.mxu0 0.0
        %1304 = vmatprep.subr.mxu0 0.0
        %1305 = vmatpush1.msra.mxu0 0.0
        %1306 = vmatprep.subr.mxu0 0.0
        %1307 = vmatpush1.msra.mxu0 0.0
        %1308 = vmatprep.subr.mxu0 0.0
        %1309 = vmatpush1.msra.mxu0 0.0
        %1310 = vmatprep.subr.mxu0 0.0
        %1311 = vmatpush1.msra.mxu0 0.0
        %1312 = vmatprep.subr.mxu0 0.0
        %1313 = vmatpush1.msra.mxu0 0.0
        %1314 = vmatprep.subr.mxu0 0.0
        %1315 = vmatpush1.msra.mxu0 0.0
        %1316 = vmatprep.subr.mxu0 0.0
        %1317 = vmatpush1.msra.mxu0 0.0
        %1318 = vmatprep.mubr.f32.mxu0 0.0
        %1319 = vmatmul.mubr.f32.gmra.mrb[0].mxu0 %v1252
        %v1320 = vpop.f32.mrb[0].mxu0
        %v1321 = vadd.f32 0.0, %v1320
        %v1322 = vpop.f32.mrb[0].mxu0
        %1323 = vdwg.mxu0
        %1324 = vrot.lane.b32.xlu0 %v1049, 64
        %v1325 = vpop.permute.xlu0 %1324
        %v1328 = vsel %vm1225, %v1247, 0
        %1330 = vmatprep.subr.mxu0 0.0
        %1331 = vmatpush1.msra.mxu0 %v1325
        %1332 = vmatprep.subr.mxu0 0.0
        %1333 = vmatpush1.msra.mxu0 0.0
        %1334 = vmatprep.subr.mxu0 0.0
        %1335 = vmatpush1.msra.mxu0 0.0
        %1336 = vmatprep.subr.mxu0 0.0
        %1337 = vmatpush1.msra.mxu0 0.0
        %1338 = vmatprep.subr.mxu0 0.0
        %1339 = vmatpush1.msra.mxu0 0.0
        %1340 = vmatprep.subr.mxu0 0.0
        %1341 = vmatpush1.msra.mxu0 0.0
        %1342 = vmatprep.subr.mxu0 0.0
        %1343 = vmatpush1.msra.mxu0 0.0
        %1344 = vmatprep.subr.mxu0 0.0
        %1345 = vmatpush1.msra.mxu0 0.0
        %1346 = vmatprep.subr.mxu0 0.0
        %1347 = vmatpush1.msra.mxu0 0.0
        %1348 = vmatprep.subr.mxu0 0.0
        %1349 = vmatpush1.msra.mxu0 0.0
        %1350 = vmatprep.subr.mxu0 0.0
        %1351 = vmatpush1.msra.mxu0 0.0
        %1352 = vmatprep.subr.mxu0 0.0
        %1353 = vmatpush1.msra.mxu0 0.0
        %1354 = vmatprep.subr.mxu0 0.0
        %1355 = vmatpush1.msra.mxu0 0.0
        %1356 = vmatprep.subr.mxu0 0.0
        %1357 = vmatpush1.msra.mxu0 0.0
        %1358 = vmatprep.subr.mxu0 0.0
        %1359 = vmatpush1.msra.mxu0 0.0
        %1360 = vmatprep.subr.mxu0 0.0
        %1361 = vmatpush1.msra.mxu0 0.0
        %1362 = vmatprep.subr.mxu0 0.0
        %1363 = vmatpush1.msra.mxu0 0.0
        %1364 = vmatprep.subr.mxu0 0.0
        %1365 = vmatpush1.msra.mxu0 0.0
        %1366 = vmatprep.subr.mxu0 0.0
        %1367 = vmatpush1.msra.mxu0 0.0
        %1368 = vmatprep.subr.mxu0 0.0
        %1369 = vmatpush1.msra.mxu0 0.0
        %1370 = vmatprep.subr.mxu0 0.0
        %1371 = vmatpush1.msra.mxu0 0.0
        %1372 = vmatprep.subr.mxu0 0.0
        %1373 = vmatpush1.msra.mxu0 0.0
        %1374 = vmatprep.subr.mxu0 0.0
        %1375 = vmatpush1.msra.mxu0 0.0
        %1376 = vmatprep.subr.mxu0 0.0
        %1377 = vmatpush1.msra.mxu0 0.0
        %1378 = vmatprep.subr.mxu0 0.0
        %1379 = vmatpush1.msra.mxu0 0.0
        %1380 = vmatprep.subr.mxu0 0.0
        %1381 = vmatpush1.msra.mxu0 0.0
        %1382 = vmatprep.subr.mxu0 0.0
        %1383 = vmatpush1.msra.mxu0 0.0
        %1384 = vmatprep.subr.mxu0 0.0
        %1385 = vmatpush1.msra.mxu0 0.0
        %1386 = vmatprep.subr.mxu0 0.0
        %1387 = vmatpush1.msra.mxu0 0.0
        %1388 = vmatprep.subr.mxu0 0.0
        %1389 = vmatpush1.msra.mxu0 0.0
        %1390 = vmatprep.subr.mxu0 0.0
        %1391 = vmatpush1.msra.mxu0 0.0
        %1392 = vmatprep.subr.mxu0 0.0
        %1393 = vmatpush1.msra.mxu0 0.0
        %1394 = vmatprep.mubr.f32.mxu0 0.0
        %1395 = vmatmul.mubr.f32.gmra.mrb[0].mxu0 %v1328
        %v1396 = vpop.f32.mrb[0].mxu0
        %v1397 = vadd.f32 0.0, %v1396
        %v1398 = vpop.f32.mrb[0].mxu0
        %1399 = vdwg.mxu0
        %1400 = vrot.lane.b32.xlu0 %v1044, 112
        %v1401 = vpop.permute.xlu0 %1400
        %1402 = vrot.lane.b32.xlu0 %v1044, 80
        %v1403 = vpop.permute.xlu0 %1402
        %v1404 = vsel %vm1057, %v1401, 0
        %v1406 = vsel %vm1057, %v1403, 0
        %1408 = vmatprep.subr.mxu0 0.0
        %1409 = vmatpush1.xpose.msra.mxu0 %v1406
        %1410 = vmatprep.subr.mxu0 0.0
        %1411 = vmatpush1.xpose.msra.mxu0 0.0
        %1412 = vmatprep.subr.mxu0 0.0
        %1413 = vmatpush1.xpose.msra.mxu0 0.0
        %1414 = vmatprep.subr.mxu0 0.0
        %1415 = vmatpush1.xpose.msra.mxu0 0.0
        %1416 = vmatprep.subr.mxu0 0.0
        %1417 = vmatpush1.xpose.msra.mxu0 0.0
        %1418 = vmatprep.subr.mxu0 0.0
        %1419 = vmatpush1.xpose.msra.mxu0 0.0
        %1420 = vmatprep.subr.mxu0 0.0
        %1421 = vmatpush1.xpose.msra.mxu0 0.0
        %1422 = vmatprep.subr.mxu0 0.0
        %1423 = vmatpush1.xpose.msra.mxu0 0.0
        %1424 = vmatprep.subr.mxu0 0.0
        %1425 = vmatpush1.xpose.msra.mxu0 0.0
        %1426 = vmatprep.subr.mxu0 0.0
        %1427 = vmatpush1.xpose.msra.mxu0 0.0
        %1428 = vmatprep.subr.mxu0 0.0
        %1429 = vmatpush1.xpose.msra.mxu0 0.0
        %1430 = vmatprep.subr.mxu0 0.0
        %1431 = vmatpush1.xpose.msra.mxu0 0.0
        %1432 = vmatprep.subr.mxu0 0.0
        %1433 = vmatpush1.xpose.msra.mxu0 0.0
        %1434 = vmatprep.subr.mxu0 0.0
        %1435 = vmatpush1.xpose.msra.mxu0 0.0
        %1436 = vmatprep.subr.mxu0 0.0
        %1437 = vmatpush1.xpose.msra.mxu0 0.0
        %1438 = vmatprep.subr.mxu0 0.0
        %1439 = vmatpush1.xpose.msra.mxu0 0.0
        %1440 = vmatprep.subr.mxu0 0.0
        %1441 = vmatpush1.xpose.msra.mxu0 0.0
        %1442 = vmatprep.subr.mxu0 0.0
        %1443 = vmatpush1.xpose.msra.mxu0 0.0
        %1444 = vmatprep.subr.mxu0 0.0
        %1445 = vmatpush1.xpose.msra.mxu0 0.0
        %1446 = vmatprep.subr.mxu0 0.0
        %1447 = vmatpush1.xpose.msra.mxu0 0.0
        %1448 = vmatprep.subr.mxu0 0.0
        %1449 = vmatpush1.xpose.msra.mxu0 0.0
        %1450 = vmatprep.subr.mxu0 0.0
        %1451 = vmatpush1.xpose.msra.mxu0 0.0
        %1452 = vmatprep.subr.mxu0 0.0
        %1453 = vmatpush1.xpose.msra.mxu0 0.0
        %1454 = vmatprep.subr.mxu0 0.0
        %1455 = vmatpush1.xpose.msra.mxu0 0.0
        %1456 = vmatprep.subr.mxu0 0.0
        %1457 = vmatpush1.xpose.msra.mxu0 0.0
        %1458 = vmatprep.subr.mxu0 0.0
        %1459 = vmatpush1.xpose.msra.mxu0 0.0
        %1460 = vmatprep.subr.mxu0 0.0
        %1461 = vmatpush1.xpose.msra.mxu0 0.0
        %1462 = vmatprep.subr.mxu0 0.0
        %1463 = vmatpush1.xpose.msra.mxu0 0.0
        %1464 = vmatprep.subr.mxu0 0.0
        %1465 = vmatpush1.xpose.msra.mxu0 0.0
        %1466 = vmatprep.subr.mxu0 0.0
        %1467 = vmatpush1.xpose.msra.mxu0 0.0
        %1468 = vmatprep.subr.mxu0 0.0
        %1469 = vmatpush1.xpose.msra.mxu0 0.0
        %1470 = vmatprep.subr.mxu0 0.0
        %1471 = vmatpush1.xpose.msra.mxu0 0.0
        %1472 = vmatprep.mubr.f32.mxu0 0.0
        %1473 = vmatmul.mubr.f32.gmra.mrb[0].mxu0 %v1404
        %v1474 = vpop.f32.mrb[0].mxu0
        %v1475 = vadd.f32 0.0, %v1474
        %v1476 = vpop.f32.mrb[0].mxu0
        %1477 = vdwg.mxu0
        %1478 = vrot.lane.b32.xlu0 %v1049, 112
        %v1479 = vpop.permute.xlu0 %1478
        %1480 = vrot.lane.b32.xlu0 %v1049, 80
        %v1481 = vpop.permute.xlu0 %1480
        %v1482 = vsel %vm1057, %v1479, 0
        %v1484 = vsel %vm1057, %v1481, 0
        %1486 = vmatprep.subr.mxu0 0.0
        %1487 = vmatpush1.xpose.msra.mxu0 %v1484
        %1488 = vmatprep.subr.mxu0 0.0
        %1489 = vmatpush1.xpose.msra.mxu0 0.0
        %1490 = vmatprep.subr.mxu0 0.0
        %1491 = vmatpush1.xpose.msra.mxu0 0.0
        %1492 = vmatprep.subr.mxu0 0.0
        %1493 = vmatpush1.xpose.msra.mxu0 0.0
        %1494 = vmatprep.subr.mxu0 0.0
        %1495 = vmatpush1.xpose.msra.mxu0 0.0
        %1496 = vmatprep.subr.mxu0 0.0
        %1497 = vmatpush1.xpose.msra.mxu0 0.0
        %1498 = vmatprep.subr.mxu0 0.0
        %1499 = vmatpush1.xpose.msra.mxu0 0.0
        %1500 = vmatprep.subr.mxu0 0.0
        %1501 = vmatpush1.xpose.msra.mxu0 0.0
        %1502 = vmatprep.subr.mxu0 0.0
        %1503 = vmatpush1.xpose.msra.mxu0 0.0
        %1504 = vmatprep.subr.mxu0 0.0
        %1505 = vmatpush1.xpose.msra.mxu0 0.0
        %1506 = vmatprep.subr.mxu0 0.0
        %1507 = vmatpush1.xpose.msra.mxu0 0.0
        %1508 = vmatprep.subr.mxu0 0.0
        %1509 = vmatpush1.xpose.msra.mxu0 0.0
        %1510 = vmatprep.subr.mxu0 0.0
        %1511 = vmatpush1.xpose.msra.mxu0 0.0
        %1512 = vmatprep.subr.mxu0 0.0
        %1513 = vmatpush1.xpose.msra.mxu0 0.0
        %1514 = vmatprep.subr.mxu0 0.0
        %1515 = vmatpush1.xpose.msra.mxu0 0.0
        %1516 = vmatprep.subr.mxu0 0.0
        %1517 = vmatpush1.xpose.msra.mxu0 0.0
        %1518 = vmatprep.subr.mxu0 0.0
        %1519 = vmatpush1.xpose.msra.mxu0 0.0
        %1520 = vmatprep.subr.mxu0 0.0
        %1521 = vmatpush1.xpose.msra.mxu0 0.0
        %1522 = vmatprep.subr.mxu0 0.0
        %1523 = vmatpush1.xpose.msra.mxu0 0.0
        %1524 = vmatprep.subr.mxu0 0.0
        %1525 = vmatpush1.xpose.msra.mxu0 0.0
        %1526 = vmatprep.subr.mxu0 0.0
        %1527 = vmatpush1.xpose.msra.mxu0 0.0
        %1528 = vmatprep.subr.mxu0 0.0
        %1529 = vmatpush1.xpose.msra.mxu0 0.0
        %1530 = vmatprep.subr.mxu0 0.0
        %1531 = vmatpush1.xpose.msra.mxu0 0.0
        %1532 = vmatprep.subr.mxu0 0.0
        %1533 = vmatpush1.xpose.msra.mxu0 0.0
        %1534 = vmatprep.subr.mxu0 0.0
        %1535 = vmatpush1.xpose.msra.mxu0 0.0
        %1536 = vmatprep.subr.mxu0 0.0
        %1537 = vmatpush1.xpose.msra.mxu0 0.0
        %1538 = vmatprep.subr.mxu0 0.0
        %1539 = vmatpush1.xpose.msra.mxu0 0.0
        %1540 = vmatprep.subr.mxu0 0.0
        %1541 = vmatpush1.xpose.msra.mxu0 0.0
        %1542 = vmatprep.subr.mxu0 0.0
        %1543 = vmatpush1.xpose.msra.mxu0 0.0
        %1544 = vmatprep.subr.mxu0 0.0
        %1545 = vmatpush1.xpose.msra.mxu0 0.0
        %1546 = vmatprep.subr.mxu0 0.0
        %1547 = vmatpush1.xpose.msra.mxu0 0.0
        %1548 = vmatprep.subr.mxu0 0.0
        %1549 = vmatpush1.xpose.msra.mxu0 0.0
        %1550 = vmatprep.mubr.f32.mxu0 0.0
        %1551 = vmatmul.mubr.f32.gmra.mrb[0].mxu0 %v1482
        %v1552 = vpop.f32.mrb[0].mxu0
        %v1553 = vadd.f32 0.0, %v1552
        %v1554 = vpop.f32.mrb[0].mxu0
        %1555 = vdwg.mxu0
        %v1556 = vmul.f32 %v1475, 0.25
        %v1557 = vmul.f32 %v1553, 0.25
        %v1558 = vadd.f32 %v1556, %v1216
        %v1559 = vadd.f32 %v1557, %v1220
        %v1560 = vsel %vm1225, %v1558, -inf
        %1561 = vmax.xlane.f32.xlu0 %v1560
        %v1562 = vpop.xlane.xlu0 %1561
        %v1563 = vsel %vm1225, %v1559, -inf
        %1564 = vmax.xlane.f32.xlu0 %v1563
        %v1565 = vpop.xlane.xlu0 %1564
        %v1566 = vsub.f32 %v1558, %v1562
        %v1567 = vsub.f32 %v1559, %v1565
        %v1568 = vmul.f32 %v1566, 1.442695
        %v1569 = vpow.pop %v1568
        %v1570 = vmul.f32 %v1567, 1.442695
        %v1571 = vpow.pop %v1570
        %v1572 = vsel %vm1225, %v1569, 0.0
        %1573 = vadd.xlane.f32.xlu0 %v1572
        %v1574 = vpop.xlane.xlu0 %1573
        %v1575 = vsel %vm1225, %v1571, 0.0
        %1576 = vadd.xlane.f32.xlu0 %v1575
        %v1577 = vpop.xlane.xlu0 %1576
        %v1578 = vrcp.pop %v1574
        %v1579 = vmul.f32 %v1569, %v1578
        %v1580 = vrcp.pop %v1577
        %v1581 = vmul.f32 %v1571, %v1580
        %1582 = vrot.lane.b32.xlu0 %v1044, 48
        %v1583 = vpop.permute.xlu0 %1582
        %v1586 = vsel %vm1225, %v1579, 0
        %1588 = vmatprep.subr.mxu0 0.0
        %1589 = vmatpush1.msra.mxu0 %v1583
        %1590 = vmatprep.subr.mxu0 0.0
        %1591 = vmatpush1.msra.mxu0 0.0
        %1592 = vmatprep.subr.mxu0 0.0
        %1593 = vmatpush1.msra.mxu0 0.0
        %1594 = vmatprep.subr.mxu0 0.0
        %1595 = vmatpush1.msra.mxu0 0.0
        %1596 = vmatprep.subr.mxu0 0.0
        %1597 = vmatpush1.msra.mxu0 0.0
        %1598 = vmatprep.subr.mxu0 0.0
        %1599 = vmatpush1.msra.mxu0 0.0
        %1600 = vmatprep.subr.mxu0 0.0
        %1601 = vmatpush1.msra.mxu0 0.0
        %1602 = vmatprep.subr.mxu0 0.0
        %1603 = vmatpush1.msra.mxu0 0.0
        %1604 = vmatprep.subr.mxu0 0.0
        %1605 = vmatpush1.msra.mxu0 0.0
        %1606 = vmatprep.subr.mxu0 0.0
        %1607 = vmatpush1.msra.mxu0 0.0
        %1608 = vmatprep.subr.mxu0 0.0
        %1609 = vmatpush1.msra.mxu0 0.0
        %1610 = vmatprep.subr.mxu0 0.0
        %1611 = vmatpush1.msra.mxu0 0.0
        %1612 = vmatprep.subr.mxu0 0.0
        %1613 = vmatpush1.msra.mxu0 0.0
        %1614 = vmatprep.subr.mxu0 0.0
        %1615 = vmatpush1.msra.mxu0 0.0
        %1616 = vmatprep.subr.mxu0 0.0
        %1617 = vmatpush1.msra.mxu0 0.0
        %1618 = vmatprep.subr.mxu0 0.0
        %1619 = vmatpush1.msra.mxu0 0.0
        %1620 = vmatprep.subr.mxu0 0.0
        %1621 = vmatpush1.msra.mxu0 0.0
        %1622 = vmatprep.subr.mxu0 0.0
        %1623 = vmatpush1.msra.mxu0 0.0
        %1624 = vmatprep.subr.mxu0 0.0
        %1625 = vmatpush1.msra.mxu0 0.0
        %1626 = vmatprep.subr.mxu0 0.0
        %1627 = vmatpush1.msra.mxu0 0.0
        %1628 = vmatprep.subr.mxu0 0.0
        %1629 = vmatpush1.msra.mxu0 0.0
        %1630 = vmatprep.subr.mxu0 0.0
        %1631 = vmatpush1.msra.mxu0 0.0
        %1632 = vmatprep.subr.mxu0 0.0
        %1633 = vmatpush1.msra.mxu0 0.0
        %1634 = vmatprep.subr.mxu0 0.0
        %1635 = vmatpush1.msra.mxu0 0.0
        %1636 = vmatprep.subr.mxu0 0.0
        %1637 = vmatpush1.msra.mxu0 0.0
        %1638 = vmatprep.subr.mxu0 0.0
        %1639 = vmatpush1.msra.mxu0 0.0
        %1640 = vmatprep.subr.mxu0 0.0
        %1641 = vmatpush1.msra.mxu0 0.0
        %1642 = vmatprep.subr.mxu0 0.0
        %1643 = vmatpush1.msra.mxu0 0.0
        %1644 = vmatprep.subr.mxu0 0.0
        %1645 = vmatpush1.msra.mxu0 0.0
        %1646 = vmatprep.subr.mxu0 0.0
        %1647 = vmatpush1.msra.mxu0 0.0
        %1648 = vmatprep.subr.mxu0 0.0
        %1649 = vmatpush1.msra.mxu0 0.0
        %1650 = vmatprep.subr.mxu0 0.0
        %1651 = vmatpush1.msra.mxu0 0.0
        %1652 = vmatprep.mubr.f32.mxu0 0.0
        %1653 = vmatmul.mubr.f32.gmra.mrb[0].mxu0 %v1586
        %v1654 = vpop.f32.mrb[0].mxu0
        %v1655 = vadd.f32 0.0, %v1654
        %v1656 = vpop.f32.mrb[0].mxu0
        %1657 = vdwg.mxu0
        %1658 = vrot.lane.b32.xlu0 %v1049, 48
        %v1659 = vpop.permute.xlu0 %1658
        %v1662 = vsel %vm1225, %v1581, 0
        %1664 = vmatprep.subr.mxu0 0.0
        %1665 = vmatpush1.msra.mxu0 %v1659
        %1666 = vmatprep.subr.mxu0 0.0
        %1667 = vmatpush1.msra.mxu0 0.0
        %1668 = vmatprep.subr.mxu0 0.0
        %1669 = vmatpush1.msra.mxu0 0.0
        %1670 = vmatprep.subr.mxu0 0.0
        %1671 = vmatpush1.msra.mxu0 0.0
        %1672 = vmatprep.subr.mxu0 0.0
        %1673 = vmatpush1.msra.mxu0 0.0
        %1674 = vmatprep.subr.mxu0 0.0
        %1675 = vmatpush1.msra.mxu0 0.0
        %1676 = vmatprep.subr.mxu0 0.0
        %1677 = vmatpush1.msra.mxu0 0.0
        %1678 = vmatprep.subr.mxu0 0.0
        %1679 = vmatpush1.msra.mxu0 0.0
        %1680 = vmatprep.subr.mxu0 0.0
        %1681 = vmatpush1.msra.mxu0 0.0
        %1682 = vmatprep.subr.mxu0 0.0
        %1683 = vmatpush1.msra.mxu0 0.0
        %1684 = vmatprep.subr.mxu0 0.0
        %1685 = vmatpush1.msra.mxu0 0.0
        %1686 = vmatprep.subr.mxu0 0.0
        %1687 = vmatpush1.msra.mxu0 0.0
        %1688 = vmatprep.subr.mxu0 0.0
        %1689 = vmatpush1.msra.mxu0 0.0
        %1690 = vmatprep.subr.mxu0 0.0
        %1691 = vmatpush1.msra.mxu0 0.0
        %1692 = vmatprep.subr.mxu0 0.0
        %1693 = vmatpush1.msra.mxu0 0.0
        %1694 = vmatprep.subr.mxu0 0.0
        %1695 = vmatpush1.msra.mxu0 0.0
        %1696 = vmatprep.subr.mxu0 0.0
        %1697 = vmatpush1.msra.mxu0 0.0
        %1698 = vmatprep.subr.mxu0 0.0
        %1699 = vmatpush1.msra.mxu0 0.0
        %1700 = vmatprep.subr.mxu0 0.0
        %1701 = vmatpush1.msra.mxu0 0.0
        %1702 = vmatprep.subr.mxu0 0.0
        %1703 = vmatpush1.msra.mxu0 0.0
        %1704 = vmatprep.subr.mxu0 0.0
        %1705 = vmatpush1.msra.mxu0 0.0
        %1706 = vmatprep.subr.mxu0 0.0
        %1707 = vmatpush1.msra.mxu0 0.0
        %1708 = vmatprep.subr.mxu0 0.0
        %1709 = vmatpush1.msra.mxu0 0.0
        %1710 = vmatprep.subr.mxu0 0.0
        %1711 = vmatpush1.msra.mxu0 0.0
        %1712 = vmatprep.subr.mxu0 0.0
        %1713 = vmatpush1.msra.mxu0 0.0
        %1714 = vmatprep.subr.mxu0 0.0
        %1715 = vmatpush1.msra.mxu0 0.0
        %1716 = vmatprep.subr.mxu0 0.0
        %1717 = vmatpush1.msra.mxu0 0.0
        %1718 = vmatprep.subr.mxu0 0.0
        %1719 = vmatpush1.msra.mxu0 0.0
        %1720 = vmatprep.subr.mxu0 0.0
        %1721 = vmatpush1.msra.mxu0 0.0
        %1722 = vmatprep.subr.mxu0 0.0
        %1723 = vmatpush1.msra.mxu0 0.0
        %1724 = vmatprep.subr.mxu0 0.0
        %1725 = vmatpush1.msra.mxu0 0.0
        %1726 = vmatprep.subr.mxu0 0.0
        %1727 = vmatpush1.msra.mxu0 0.0
        %1728 = vmatprep.mubr.f32.mxu0 0.0
        %1729 = vmatmul.mubr.f32.gmra.mrb[0].mxu0 %v1662
        %v1730 = vpop.f32.mrb[0].mxu0
        %v1731 = vadd.f32 0.0, %v1730
        %v1732 = vpop.f32.mrb[0].mxu0
        %1733 = vdwg.mxu0
        %1736 = vrot.lane.b32.xlu0 %v1655, 16
        %v1737 = vpop.permute.xlu0 %1736
        %1738 = vrot.lane.b32.xlu0 %v1731, 16
        %v1739 = vpop.permute.xlu0 %1738
        %v1742 = vsel %vm1057, %v1321, %v1737
        %v1743 = vsel %vm1057, %v1397, %v1739
        %v1744 = vld [vmem:[%s864] sm:$0xff]
        %v1745 = vld [vmem:[%s864 + $0x8] sm:$0xff]
        %v1746 = vld [vmem:[%s864 + $0x10] sm:$0xff]
        %v1747 = vld [vmem:[%s864 + $0x18] sm:$0xff]
        %v1748 = vld [vmem:[%s867] sm:$0x1]
        %v1750 = vlaneseq
        %v1751 = vshrl.u32 %v1750, 7
        %v1752 = vsub.s32 0, %v1751
        %v1753 = vrot.slane %v1748, %v1752
        %v1756 = vsel %vm970, %v1742, 0
        %v1759 = vsel %vm970, %v1743, 0
        %1761 = vmatprep.subr.mxu0 0.0
        %1762 = vmatpush1.msra.mxu0 %v1744
        %1763 = vmatprep.subr.mxu0 0.0
        %1764 = vmatpush1.msra.mxu0 %v1745
        %1765 = vmatprep.subr.mxu0 0.0
        %1766 = vmatpush1.msra.mxu0 %v1746
        %1767 = vmatprep.subr.mxu0 0.0
        %1768 = vmatpush1.msra.mxu0 %v1747
        %1769 = vmatprep.subr.mxu0 0.0
        %1770 = vmatpush1.msra.mxu0 0.0
        %1771 = vmatprep.subr.mxu0 0.0
        %1772 = vmatpush1.msra.mxu0 0.0
        %1773 = vmatprep.subr.mxu0 0.0
        %1774 = vmatpush1.msra.mxu0 0.0
        %1775 = vmatprep.subr.mxu0 0.0
        %1776 = vmatpush1.msra.mxu0 0.0
        %1777 = vmatprep.subr.mxu0 0.0
        %1778 = vmatpush1.msra.mxu0 0.0
        %1779 = vmatprep.subr.mxu0 0.0
        %1780 = vmatpush1.msra.mxu0 0.0
        %1781 = vmatprep.subr.mxu0 0.0
        %1782 = vmatpush1.msra.mxu0 0.0
        %1783 = vmatprep.subr.mxu0 0.0
        %1784 = vmatpush1.msra.mxu0 0.0
        %1785 = vmatprep.subr.mxu0 0.0
        %1786 = vmatpush1.msra.mxu0 0.0
        %1787 = vmatprep.subr.mxu0 0.0
        %1788 = vmatpush1.msra.mxu0 0.0
        %1789 = vmatprep.subr.mxu0 0.0
        %1790 = vmatpush1.msra.mxu0 0.0
        %1791 = vmatprep.subr.mxu0 0.0
        %1792 = vmatpush1.msra.mxu0 0.0
        %1793 = vmatprep.subr.mxu0 0.0
        %1794 = vmatpush1.msra.mxu0 0.0
        %1795 = vmatprep.subr.mxu0 0.0
        %1796 = vmatpush1.msra.mxu0 0.0
        %1797 = vmatprep.subr.mxu0 0.0
        %1798 = vmatpush1.msra.mxu0 0.0
        %1799 = vmatprep.subr.mxu0 0.0
        %1800 = vmatpush1.msra.mxu0 0.0
        %1801 = vmatprep.subr.mxu0 0.0
        %1802 = vmatpush1.msra.mxu0 0.0
        %1803 = vmatprep.subr.mxu0 0.0
        %1804 = vmatpush1.msra.mxu0 0.0
        %1805 = vmatprep.subr.mxu0 0.0
        %1806 = vmatpush1.msra.mxu0 0.0
        %1807 = vmatprep.subr.mxu0 0.0
        %1808 = vmatpush1.msra.mxu0 0.0
        %1809 = vmatprep.subr.mxu0 0.0
        %1810 = vmatpush1.msra.mxu0 0.0
        %1811 = vmatprep.subr.mxu0 0.0
        %1812 = vmatpush1.msra.mxu0 0.0
        %1813 = vmatprep.subr.mxu0 0.0
        %1814 = vmatpush1.msra.mxu0 0.0
        %1815 = vmatprep.subr.mxu0 0.0
        %1816 = vmatpush1.msra.mxu0 0.0
        %1817 = vmatprep.subr.mxu0 0.0
        %1818 = vmatpush1.msra.mxu0 0.0
        %1819 = vmatprep.subr.mxu0 0.0
        %1820 = vmatpush1.msra.mxu0 0.0
        %1821 = vmatprep.subr.mxu0 0.0
        %1822 = vmatpush1.msra.mxu0 0.0
        %1823 = vmatprep.subr.mxu0 0.0
        %1824 = vmatpush1.msra.mxu0 0.0
        %1825 = vmatprep.mubr.f32.mxu0 0.0
        %1826 = vmatmul.mubr.f32.gmra.mrb[0].mxu0 %v1756
        %v1827 = vpop.f32.mrb[0].mxu0
        %v1828 = vadd.f32 %v1753, %v1827
        %v1829 = vpop.f32.mrb[0].mxu0
        %1830 = vmatprep.mubr.f32.mxu0 0.0
        %1831 = vmatmul.mubr.f32.gmra.mrb[0].mxu0 %v1759
        %v1832 = vpop.f32.mrb[0].mxu0
        %v1833 = vadd.f32 %v1753, %v1832
        %v1834 = vpop.f32.mrb[0].mxu0
        %1835 = vdwg.mxu0
        %v1836 = vadd.f32 %v957, %v1828
        %v1837 = vadd.f32 %v958, %v1833
        %v1838 = vld [vmem:[%s870] sm:$0x1]
        %v1839 = vld [vmem:[%s873] sm:$0x1]
        %v1840 = vsel %vm970, %v1836, 0.0
        %1841 = vadd.xlane.f32.xlu0 %v1840
        %v1842 = vpop.xlane.xlu0 %1841
        %v1843 = vsel %vm970, %v1837, 0.0
        %1844 = vadd.xlane.f32.xlu0 %v1843
        %v1845 = vpop.xlane.xlu0 %1844
        %v1846 = vrcp.pop 32.0
        %v1847 = vmul.f32 %v1842, %v1846
        %v1848 = vmul.f32 %v1845, %v1846
        %v1849 = vsub.f32 %v1836, %v1847
        %v1850 = vsub.f32 %v1837, %v1848
        %v1851 = vmul.f32 %v1849, %v1849
        %v1852 = vmul.f32 %v1850, %v1850
        %v1853 = vsel %vm970, %v1851, 0.0
        %1854 = vadd.xlane.f32.xlu0 %v1853
        %v1855 = vpop.xlane.xlu0 %1854
        %v1856 = vsel %vm970, %v1852, 0.0
        %1857 = vadd.xlane.f32.xlu0 %v1856
        %v1858 = vpop.xlane.xlu0 %1857
        %v1859 = vmul.f32 %v1855, %v1846
        %v1860 = vmul.f32 %v1858, %v1846
        %v1861 = vadd.f32 %v1859, 1e-12
        %v1862 = vadd.f32 %v1860, 1e-12
        %v1863 = vrsqrt.pop %v1861
        %v1864 = vrsqrt.pop %v1862
        %v1865 = vmul.f32 %v1849, %v1863
        %v1866 = vmul.f32 %v1850, %v1864
        %v1868 = vlaneseq
        %v1869 = vshrl.u32 %v1868, 7
        %v1870 = vsub.s32 0, %v1869
        %v1871 = vrot.slane %v1838, %v1870
        %v1873 = vmul.f32 %v1865, %v1871
        %v1874 = vmul.f32 %v1866, %v1871
        %v1876 = vlaneseq
        %v1877 = vshrl.u32 %v1876, 7
        %v1878 = vsub.s32 0, %v1877
        %v1879 = vrot.slane %v1839, %v1878
        %v1881 = vadd.f32 %v1873, %v1879
        %v1882 = vadd.f32 %v1874, %v1879
        %v1883 = vld [vmem:[%s878] sm:$0xff]
        %v1884 = vld [vmem:[%s878 + $0x8] sm:$0xff]
        %v1885 = vld [vmem:[%s878 + $0x10] sm:$0xff]
        %v1886 = vld [vmem:[%s878 + $0x18] sm:$0xff]
        %v1887 = vld [vmem:[%s881] sm:$0x1]
        %v1889 = vlaneseq
        %v1890 = vshrl.u32 %v1889, 7
        %v1891 = vsub.s32 0, %v1890
        %v1892 = vrot.slane %v1887, %v1891
        %v1895 = vsel %vm970, %v1881, 0
        %v1898 = vsel %vm970, %v1882, 0
        %1900 = vmatprep.subr.mxu0 0.0
        %1901 = vmatpush1.msra.mxu0 %v1883
        %1902 = vmatprep.subr.mxu0 0.0
        %1903 = vmatpush1.msra.mxu0 %v1884
        %1904 = vmatprep.subr.mxu0 0.0
        %1905 = vmatpush1.msra.mxu0 %v1885
        %1906 = vmatprep.subr.mxu0 0.0
        %1907 = vmatpush1.msra.mxu0 %v1886
        %1908 = vmatprep.subr.mxu0 0.0
        %1909 = vmatpush1.msra.mxu0 0.0
        %1910 = vmatprep.subr.mxu0 0.0
        %1911 = vmatpush1.msra.mxu0 0.0
        %1912 = vmatprep.subr.mxu0 0.0
        %1913 = vmatpush1.msra.mxu0 0.0
        %1914 = vmatprep.subr.mxu0 0.0
        %1915 = vmatpush1.msra.mxu0 0.0
        %1916 = vmatprep.subr.mxu0 0.0
        %1917 = vmatpush1.msra.mxu0 0.0
        %1918 = vmatprep.subr.mxu0 0.0
        %1919 = vmatpush1.msra.mxu0 0.0
        %1920 = vmatprep.subr.mxu0 0.0
        %1921 = vmatpush1.msra.mxu0 0.0
        %1922 = vmatprep.subr.mxu0 0.0
        %1923 = vmatpush1.msra.mxu0 0.0
        %1924 = vmatprep.subr.mxu0 0.0
        %1925 = vmatpush1.msra.mxu0 0.0
        %1926 = vmatprep.subr.mxu0 0.0
        %1927 = vmatpush1.msra.mxu0 0.0
        %1928 = vmatprep.subr.mxu0 0.0
        %1929 = vmatpush1.msra.mxu0 0.0
        %1930 = vmatprep.subr.mxu0 0.0
        %1931 = vmatpush1.msra.mxu0 0.0
        %1932 = vmatprep.subr.mxu0 0.0
        %1933 = vmatpush1.msra.mxu0 0.0
        %1934 = vmatprep.subr.mxu0 0.0
        %1935 = vmatpush1.msra.mxu0 0.0
        %1936 = vmatprep.subr.mxu0 0.0
        %1937 = vmatpush1.msra.mxu0 0.0
        %1938 = vmatprep.subr.mxu0 0.0
        %1939 = vmatpush1.msra.mxu0 0.0
        %1940 = vmatprep.subr.mxu0 0.0
        %1941 = vmatpush1.msra.mxu0 0.0
        %1942 = vmatprep.subr.mxu0 0.0
        %1943 = vmatpush1.msra.mxu0 0.0
        %1944 = vmatprep.subr.mxu0 0.0
        %1945 = vmatpush1.msra.mxu0 0.0
        %1946 = vmatprep.subr.mxu0 0.0
        %1947 = vmatpush1.msra.mxu0 0.0
        %1948 = vmatprep.subr.mxu0 0.0
        %1949 = vmatpush1.msra.mxu0 0.0
        %1950 = vmatprep.subr.mxu0 0.0
        %1951 = vmatpush1.msra.mxu0 0.0
        %1952 = vmatprep.subr.mxu0 0.0
        %1953 = vmatpush1.msra.mxu0 0.0
        %1954 = vmatprep.subr.mxu0 0.0
        %1955 = vmatpush1.msra.mxu0 0.0
        %1956 = vmatprep.subr.mxu0 0.0
        %1957 = vmatpush1.msra.mxu0 0.0
        %1958 = vmatprep.subr.mxu0 0.0
        %1959 = vmatpush1.msra.mxu0 0.0
        %1960 = vmatprep.subr.mxu0 0.0
        %1961 = vmatpush1.msra.mxu0 0.0
        %1962 = vmatprep.subr.mxu0 0.0
        %1963 = vmatpush1.msra.mxu0 0.0
        %1964 = vmatprep.mubr.f32.mxu0 0.0
        %1965 = vmatmul.mubr.f32.gmra.mrb[0].mxu0 %v1895
        %v1966 = vpop.f32.mrb[0].mxu0
        %v1967 = vadd.f32 %v1892, %v1966
        %v1968 = vpop.f32.mrb[0].mxu0
        %1969 = vmatprep.mubr.f32.mxu0 0.0
        %1970 = vmatmul.mubr.f32.gmra.mrb[0].mxu0 %v1898
        %v1971 = vpop.f32.mrb[0].mxu0
        %v1972 = vadd.f32 %v1892, %v1971
        %v1973 = vpop.f32.mrb[0].mxu0
        %1974 = vdwg.mxu0
        %v1975 = vmul.f32 %v1967, 0.5
        %v1976 = vmul.f32 %v1972, 0.5
        %v1977 = vmul.f32 %v1967, 0.044715
        %v1978 = vmul.f32 %v1972, 0.044715
        %v1979 = vmul.f32 %v1977, %v1967
        %v1980 = vmul.f32 %v1978, %v1972
        %v1981 = vmul.f32 %v1979, %v1967
        %v1982 = vmul.f32 %v1980, %v1972
        %v1983 = vadd.f32 %v1967, %v1981
        %v1984 = vadd.f32 %v1972, %v1982
        %v1985 = vmul.f32 %v1983, 0.7978846
        %v1986 = vmul.f32 %v1984, 0.7978846
        %v1987 = vtanh.pop %v1985
        %v1988 = vtanh.pop %v1986
        %v1989 = vadd.f32 %v1987, 1.0
        %v1990 = vadd.f32 %v1988, 1.0
        %v1991 = vmul.f32 %v1975, %v1989
        %v1992 = vmul.f32 %v1976, %v1990
        %v1993 = vld [vmem:[%s886] sm:$0xff]
        %v1994 = vld [vmem:[%s886 + $0x8] sm:$0xff]
        %v1995 = vld [vmem:[%s886 + $0x10] sm:$0xff]
        %v1996 = vld [vmem:[%s886 + $0x18] sm:$0xff]
        %v1997 = vld [vmem:[%s886 + $0x20] sm:$0xff]
        %v1998 = vld [vmem:[%s886 + $0x28] sm:$0xff]
        %v1999 = vld [vmem:[%s886 + $0x30] sm:$0xff]
        %v2000 = vld [vmem:[%s886 + $0x38] sm:$0xff]
        %v2001 = vld [vmem:[%s889] sm:$0x1]
        %v2003 = vlaneseq
        %v2004 = vshrl.u32 %v2003, 7
        %v2005 = vsub.s32 0, %v2004
        %v2006 = vrot.slane %v2001, %v2005
        %vm2008 = vcmask 523264
        %v2010 = vsel %vm2008, %v1991, 0
        %v2013 = vsel %vm2008, %v1992, 0
        %2015 = vmatprep.subr.mxu0 0.0
        %2016 = vmatpush1.msra.mxu0 %v1993
        %2017 = vmatprep.subr.mxu0 0.0
        %2018 = vmatpush1.msra.mxu0 %v1994
        %2019 = vmatprep.subr.mxu0 0.0
        %2020 = vmatpush1.msra.mxu0 %v1995
        %2021 = vmatprep.subr.mxu0 0.0
        %2022 = vmatpush1.msra.mxu0 %v1996
        %2023 = vmatprep.subr.mxu0 0.0
        %2024 = vmatpush1.msra.mxu0 %v1997
        %2025 = vmatprep.subr.mxu0 0.0
        %2026 = vmatpush1.msra.mxu0 %v1998
        %2027 = vmatprep.subr.mxu0 0.0
        %2028 = vmatpush1.msra.mxu0 %v1999
        %2029 = vmatprep.subr.mxu0 0.0
        %2030 = vmatpush1.msra.mxu0 %v2000
        %2031 = vmatprep.subr.mxu0 0.0
        %2032 = vmatpush1.msra.mxu0 0.0
        %2033 = vmatprep.subr.mxu0 0.0
        %2034 = vmatpush1.msra.mxu0 0.0
        %2035 = vmatprep.subr.mxu0 0.0
        %2036 = vmatpush1.msra.mxu0 0.0
        %2037 = vmatprep.subr.mxu0 0.0
        %2038 = vmatpush1.msra.mxu0 0.0
        %2039 = vmatprep.subr.mxu0 0.0
        %2040 = vmatpush1.msra.mxu0 0.0
        %2041 = vmatprep.subr.mxu0 0.0
        %2042 = vmatpush1.msra.mxu0 0.0
        %2043 = vmatprep.subr.mxu0 0.0
        %2044 = vmatpush1.msra.mxu0 0.0
        %2045 = vmatprep.subr.mxu0 0.0
        %2046 = vmatpush1.msra.mxu0 0.0
        %2047 = vmatprep.subr.mxu0 0.0
        %2048 = vmatpush1.msra.mxu0 0.0
        %2049 = vmatprep.subr.mxu0 0.0
        %2050 = vmatpush1.msra.mxu0 0.0
        %2051 = vmatprep.subr.mxu0 0.0
        %2052 = vmatpush1.msra.mxu0 0.0
        %2053 = vmatprep.subr.mxu0 0.0
        %2054 = vmatpush1.msra.mxu0 0.0
        %2055 = vmatprep.subr.mxu0 0.0
        %2056 = vmatpush1.msra.mxu0 0.0
        %2057 = vmatprep.subr.mxu0 0.0
        %2058 = vmatpush1.msra.mxu0 0.0
        %2059 = vmatprep.subr.mxu0 0.0
        %2060 = vmatpush1.msra.mxu0 0.0
        %2061 = vmatprep.subr.mxu0 0.0
        %2062 = vmatpush1.msra.mxu0 0.0
        %2063 = vmatprep.subr.mxu0 0.0
        %2064 = vmatpush1.msra.mxu0 0.0
        %2065 = vmatprep.subr.mxu0 0.0
        %2066 = vmatpush1.msra.mxu0 0.0
        %2067 = vmatprep.subr.mxu0 0.0
        %2068 = vmatpush1.msra.mxu0 0.0
        %2069 = vmatprep.subr.mxu0 0.0
        %2070 = vmatpush1.msra.mxu0 0.0
        %2071 = vmatprep.subr.mxu0 0.0
        %2072 = vmatpush1.msra.mxu0 0.0
        %2073 = vmatprep.subr.mxu0 0.0
        %2074 = vmatpush1.msra.mxu0 0.0
        %2075 = vmatprep.subr.mxu0 0.0
        %2076 = vmatpush1.msra.mxu0 0.0
        %2077 = vmatprep.subr.mxu0 0.0
        %2078 = vmatpush1.msra.mxu0 0.0
        %2079 = vmatprep.mubr.f32.mxu0 0.0
        %2080 = vmatmul.mubr.f32.gmra.mrb[0].mxu0 %v2010
        %v2081 = vpop.f32.mrb[0].mxu0
        %v2082 = vadd.f32 %v2006, %v2081
        %v2083 = vpop.f32.mrb[0].mxu0
        %2084 = vmatprep.mubr.f32.mxu0 0.0
        %2085 = vmatmul.mubr.f32.gmra.mrb[0].mxu0 %v2013
        %v2086 = vpop.f32.mrb[0].mxu0
        %v2087 = vadd.f32 %v2006, %v2086
        %v2088 = vpop.f32.mrb[0].mxu0
        %2089 = vdwg.mxu0
        %v2090 = vadd.f32 %v1881, %v2082
        %v2091 = vadd.f32 %v1882, %v2087
        %v2092 = vld [vmem:[%s892] sm:$0x1]
        %v2093 = vld [vmem:[%s895] sm:$0x1]
        %v2094 = vsel %vm970, %v2090, 0.0
        %2095 = vadd.xlane.f32.xlu0 %v2094
        %v2096 = vpop.xlane.xlu0 %2095
        %v2097 = vsel %vm970, %v2091, 0.0
        %2098 = vadd.xlane.f32.xlu0 %v2097
        %v2099 = vpop.xlane.xlu0 %2098
        %v2100 = vmul.f32 %v2096, %v1846
        %v2101 = vmul.f32 %v2099, %v1846
        %v2102 = vsub.f32 %v2090, %v2100
        %v2103 = vsub.f32 %v2091, %v2101
        %v2104 = vmul.f32 %v2102, %v2102
        %v2105 = vmul.f32 %v2103, %v2103
        %v2106 = vsel %vm970, %v2104, 0.0
        %2107 = vadd.xlane.f32.xlu0 %v2106
        %v2108 = vpop.xlane.xlu0 %2107
        %v2109 = vsel %vm970, %v2105, 0.0
        %2110 = vadd.xlane.f32.xlu0 %v2109
        %v2111 = vpop.xlane.xlu0 %2110
        %v2112 = vmul.f32 %v2108, %v1846
        %v2113 = vmul.f32 %v2111, %v1846
        %v2114 = vadd.f32 %v2112, 1e-12
        %v2115 = vadd.f32 %v2113, 1e-12
        %v2116 = vrsqrt.pop %v2114
        %v2117 = vrsqrt.pop %v2115
        %v2118 = vmul.f32 %v2102, %v2116
        %v2119 = vmul.f32 %v2103, %v2117
        %v2121 = vlaneseq
        %v2122 = vshrl.u32 %v2121, 7
        %v2123 = vsub.s32 0, %v2122
        %v2124 = vrot.slane %v2092, %v2123
        %v2126 = vmul.f32 %v2118, %v2124
        %v2127 = vmul.f32 %v2119, %v2124
        %v2129 = vlaneseq
        %v2130 = vshrl.u32 %v2129, 7
        %v2131 = vsub.s32 0, %v2130
        %v2132 = vrot.slane %v2093, %v2131
        %v2134 = vadd.f32 %v2126, %v2132
        %v2135 = vadd.f32 %v2127, %v2132
        %2136 = vst.msk [vmem:[#allocation2] sm:$0xff] %vm970, %v2134
        %2137 = vst.msk [vmem:[#allocation2 + $0x8] sm:$0xff] %vm970, %v2135
        %p2138 = scmp.eq.s32.totalorder %s39, 1
        // Predicated region
        $region117: #{bleurt_forward.1} parent=111 // pred_check
          %p2139 = pneg %p2138
        $region118: #{bleurt_forward.1} parent=111 // pred_check_branch
          %2141 = sbr.rel (%p2139) target = $region120
        $region119: #{bleurt_forward.1} parent=111 // pred_region
          %v2142 = vld [vmem:[%s19] sm:$0xff]
          %v2143 = vld [vmem:[%s19 + $0x8] sm:$0xff]
          %v2144 = vld [vmem:[%s19 + $0x10] sm:$0xff]
          %v2145 = vld [vmem:[%s19 + $0x18] sm:$0xff]
          %v2146 = vld [vmem:[%s20] sm:$0x1]
          %v2148 = vlaneseq
          %v2149 = vshrl.u32 %v2148, 7
          %v2150 = vsub.s32 0, %v2149
          %v2151 = vrot.slane %v2146, %v2150
          %v2155 = vrot.slane %v2135, 7
          %vm2156 = vcmask 1041409
          %v2157 = vsel %vm2156, %v2155, %v2134
          %v2158 = vsel %vm970, %v2157, 0
          %2160 = vmatprep.subr.mxu0 0.0
          %2161 = vmatpush1.msra.mxu0 %v2142
          %2162 = vmatprep.subr.mxu0 0.0
          %2163 = vmatpush1.msra.mxu0 %v2143
          %2164 = vmatprep.subr.mxu0 0.0
          %2165 = vmatpush1.msra.mxu0 %v2144
          %2166 = vmatprep.subr.mxu0 0.0
          %2167 = vmatpush1.msra.mxu0 %v2145
          %2168 = vmatprep.subr.mxu0 0.0
          %2169 = vmatpush1.msra.mxu0 0.0
          %2170 = vmatprep.subr.mxu0 0.0
          %2171 = vmatpush1.msra.mxu0 0.0
          %2172 = vmatprep.subr.mxu0 0.0
          %2173 = vmatpush1.msra.mxu0 0.0
          %2174 = vmatprep.subr.mxu0 0.0
          %2175 = vmatpush1.msra.mxu0 0.0
          %2176 = vmatprep.subr.mxu0 0.0
          %2177 = vmatpush1.msra.mxu0 0.0
          %2178 = vmatprep.subr.mxu0 0.0
          %2179 = vmatpush1.msra.mxu0 0.0
          %2180 = vmatprep.subr.mxu0 0.0
          %2181 = vmatpush1.msra.mxu0 0.0
          %2182 = vmatprep.subr.mxu0 0.0
          %2183 = vmatpush1.msra.mxu0 0.0
          %2184 = vmatprep.subr.mxu0 0.0
          %2185 = vmatpush1.msra.mxu0 0.0
          %2186 = vmatprep.subr.mxu0 0.0
          %2187 = vmatpush1.msra.mxu0 0.0
          %2188 = vmatprep.subr.mxu0 0.0
          %2189 = vmatpush1.msra.mxu0 0.0
          %2190 = vmatprep.subr.mxu0 0.0
          %2191 = vmatpush1.msra.mxu0 0.0
          %2192 = vmatprep.subr.mxu0 0.0
          %2193 = vmatpush1.msra.mxu0 0.0
          %2194 = vmatprep.subr.mxu0 0.0
          %2195 = vmatpush1.msra.mxu0 0.0
          %2196 = vmatprep.subr.mxu0 0.0
          %2197 = vmatpush1.msra.mxu0 0.0
          %2198 = vmatprep.subr.mxu0 0.0
          %2199 = vmatpush1.msra.mxu0 0.0
          %2200 = vmatprep.subr.mxu0 0.0
          %2201 = vmatpush1.msra.mxu0 0.0
          %2202 = vmatprep.subr.mxu0 0.0
          %2203 = vmatpush1.msra.mxu0 0.0
          %2204 = vmatprep.subr.mxu0 0.0
          %2205 = vmatpush1.msra.mxu0 0.0
          %2206 = vmatprep.subr.mxu0 0.0
          %2207 = vmatpush1.msra.mxu0 0.0
          %2208 = vmatprep.subr.mxu0 0.0
          %2209 = vmatpush1.msra.mxu0 0.0
          %2210 = vmatprep.subr.mxu0 0.0
          %2211 = vmatpush1.msra.mxu0 0.0
          %2212 = vmatprep.subr.mxu0 0.0
          %2213 = vmatpush1.msra.mxu0 0.0
          %2214 = vmatprep.subr.mxu0 0.0
          %2215 = vmatpush1.msra.mxu0 0.0
          %2216 = vmatprep.subr.mxu0 0.0
          %2217 = vmatpush1.msra.mxu0 0.0
          %2218 = vmatprep.subr.mxu0 0.0
          %2219 = vmatpush1.msra.mxu0 0.0
          %2220 = vmatprep.subr.mxu0 0.0
          %2221 = vmatpush1.msra.mxu0 0.0
          %2222 = vmatprep.subr.mxu0 0.0
          %2223 = vmatpush1.msra.mxu0 0.0
          %2224 = vmatprep.mubr.f32.mxu0 0.0
          %2225 = vmatmul.mubr.f32.gmra.mrb[0].mxu0 %v2158
          %v2226 = vpop.f32.mrb[0].mxu0
          %v2227 = vadd.f32 %v2151, %v2226
          %v2228 = vpop.f32.mrb[0].mxu0
          %2229 = vdwg.mxu0
          %v2230 = vtanh.pop %v2227
          %v2231 = vld [vmem:[%s21] sm:$0x1]
          %v2233 = vlaneseq
          %v2234 = vshrl.u32 %v2233, 7
          %v2235 = vsub.s32 0, %v2234
          %v2236 = vrot.slane %v2231, %v2235
          %v2238 = vmul.f32 %v2230, %v2236
          %vm2239 = vcmask 254976
          %v2240 = vsel %vm2239, %v2238, 0.0
          %2241 = vadd.xlane.f32.xlu0 %v2240
          %v2242 = vpop.xlane.xlu0 %2241
          %v2243 = vld [vmem:[#allocation3] sm:$0x1]
          %v2245 = vlaneseq
          %v2246 = vshrl.u32 %v2245, 7
          %v2247 = vsub.s32 0, %v2246
          %v2248 = vrot.slane %v2243, %v2247
          %v2250 = vadd.f32 %v2242, %v2248
          %v2251 = vld [vmem:[%s6] sm:$0x3]
          %v2252 = vsub.f32 %v2250, %v2251
          %v2253 = vmul.f32 %v2252, %v2252
          %vm2254 = vcmask 1024
          %v2255 = vsel %vm2254, %v2253, 0.0
          %2256 = vadd.xlane.f32.xlu0 %v2255
          %v2257 = vpop.xlane.xlu0 %2256
          %v2258 = vrot.slane %v2257, 4
          %v2259 = vadd.f32 %v2257, %v2258
          %v2260 = vrot.slane %v2259, 2
          %v2261 = vadd.f32 %v2259, %v2260
          %v2262 = vrot.slane %v2261, 1
          %v2263 = vadd.f32 %v2261, %v2262
          %s2264 = vtos %v2263
          %v2265 = vrcp.pop 2.0
          %s2266 = vtos %v2265
          %s2267 = smul.f32 %s2264, %s2266
          %2269 = vset.pattern.permute.xlu0 0
          %2270 = vperm.xlu0 %2269, %v2250
          %v2271 = vpop.permute.xlu0 %2270
          %2273 = vst [vmem:[%s23] sm:$0x3] %v2271
          %v2274 = vstv %s2267
          %2275 = vst [vmem:[#allocation4] sm:$0x1] %v2274
        $region120: #{bleurt_forward.1} parent=111 // pred_fallthru
          _
        // Predicated region
        $region121: #{bleurt_forward.1} parent=111 // pred_check
          %p2276 = pneg %p595
        $region122: #{bleurt_forward.1} parent=111 // pred_check_branch
          %2278 = sbr.rel (%p2276) target = $region124
        $region123: #{bleurt_forward.1} parent=111 // pred_region
          _
        $region124: #{bleurt_forward.1} parent=111 // pred_fallthru
          _
        // Predicated region
        $region125: #{bleurt_forward.1} parent=111 // pred_check
          %p2279 = pneg %p616
        $region126: #{bleurt_forward.1} parent=111 // pred_check_branch
          %2281 = sbr.rel (%p2279) target = $region128
        $region127: #{bleurt_forward.1} parent=111 // pred_region
          %s2283 = ssub.s32 16, 16
          %2284 = vsyncadd [#allocation5], %s2283
          %s2286 = sshll.u32 [#allocation4], 4
          %s2287 = int_to_ptr.vmem [resolvable:$true] %s2286
          %2289 = dma.vmem_to_hbm [thread:$0]  %s2287, 16, %s24, [#allocation5]
        $region128: #{bleurt_forward.1} parent=111 // pred_fallthru
          _
        // Predicated region
        $region129: #{bleurt_forward.1} parent=111 // pred_check
          %p2290 = pneg %p595
        $region130: #{bleurt_forward.1} parent=111 // pred_check_branch
          %2292 = sbr.rel (%p2290) target = $region132
        $region131: #{bleurt_forward.1} parent=111 // pred_region
          _
        $region132: #{bleurt_forward.1} parent=111 // pred_fallthru
          _
        // Predicated region
        $region133: #{bleurt_forward.1} parent=111 // pred_check
          %p2293 = pneg %p616
        $region134: #{bleurt_forward.1} parent=111 // pred_check_branch
          %2295 = sbr.rel (%p2293) target = $region136
        $region135: #{bleurt_forward.1} parent=111 // pred_region
          %2296 = dma.done [#allocation5], 16
        $region136: #{bleurt_forward.1} parent=111 // pred_fallthru
          _
      $region112: #{bleurt_forward.1} parent=5 // pred_fallthru
        _
      %p2297 = scmp.le.s32.totalorder 2, %s34
      // Predicated region
      $region137: #{bleurt_forward.1} parent=5 // pred_check
        %p2298 = pneg %p2297
      $region138: #{bleurt_forward.1} parent=5 // pred_check_branch
        %2300 = sbr.rel (%p2298) target = $region140
      $region139: #{bleurt_forward.1} parent=5 // pred_region
        %s2301 = ssub.s32 %s34, 2
      $region140: #{bleurt_forward.1} parent=5 // pred_fallthru
        _
    $region6: #{bleurt_forward.1} parent=1 // loop_footer
      %s38 = sadd.s32 1, %s34
    $region7: #{bleurt_forward.1} parent=1 // loop_footer_branch
      %33 = sbr.rel target = $region3
    $region8: #{bleurt_forward.1} parent=1 // loop_exit
      _
    %2302 = vsyncpa [#allocation5], 1
    %s2303 = scalar_lea.sflag [#allocation5], 1
    %2304 = vsyncpa %s2303, 1

</llo_original>
